<compile_context>
chip_gen: v6e
topology: v6e:2x2x1
jax: 0.10.0
libtpu: 0.0.40
codegen_flags: <defaults>
</compile_context>

<pallas_src>
import math

import numpy as np
import jax
import jax.numpy as jnp
from jax.experimental import pallas as pl
from jax.experimental.pallas import tpu as pltpu

LEAKY_SLOPE = 0.01      # F.leaky_relu default negative slope
RESAMPLE_K = 15         # Resample1d(..., 15, stride) fixed sinc kernel
LBUF = 128              # lane-dense width of every VMEM-resident activation
WPAD = 256              # lane width of the packed weight slab


# ----------------------------------------------------------------------------
# Fixed sinc low-pass filter.
# NOTE: keeps the reference Wave-U-Net quirk `0.08*cos(4*pi*M)` (a constant)
# instead of the textbook Blackman term `0.08*cos(4*pi*i/M)` -- do not "fix".
# ----------------------------------------------------------------------------
def build_sinc_filter(kernel_size, cutoff):
    M = kernel_size - 1
    f = np.zeros(kernel_size, np.float64)
    for i in range(kernel_size):
        if i == M // 2:
            f[i] = 2 * math.pi * cutoff
        else:
            f[i] = (math.sin(2 * math.pi * cutoff * (i - M // 2)) / (i - M // 2)) * \
                   (0.42 - 0.5 * math.cos((2 * math.pi * i) / M)
                    + 0.08 * math.cos(4 * math.pi * M))
    f = f / f.sum()
    return f.astype(np.float32)


def _reflect_index(t, L):
    if t < 0:
        return -t
    if t >= L:
        return 2 * L - 2 - t
    return t


def make_down_matrix(L, stride, filt):
    """(L, Lout) matrix = reflect pad + depthwise sinc conv + stride decimation
    (polyphase: only the kept output samples are represented)."""
    K = len(filt)
    p = (K - 1) // 2
    assert L % stride == 1 and L > p
    Lout = (L - 1) // stride + 1
    R = np.zeros((L, Lout), np.float32)
    for j in range(Lout):
        for k in range(K):
            R[_reflect_index(j * stride + k - p, L), j] += filt[k]
    return R, Lout


def make_up_matrix(L, stride, filt):
    """(L, Lout) matrix = reflect pad + depthwise transposed sinc conv (stride
    s) + symmetric crop back to (L-1)*s+1 (no zero-stuffed intermediate)."""
    K = len(filt)
    p = (K - 1) // 2
    assert L > p
    Lout = (L - 1) * stride + 1
    Lp = L + 2 * p
    c = p * (stride + 1)          # total symmetric crop of the full transposed conv
    R = np.zeros((L, Lout), np.float32)
    for t in range(Lout):
        m = t + c
        for j in range(Lp):
            k = m - j * stride
            if 0 <= k < K:
                R[_reflect_index(j - p, L), t] += filt[k]
    return R, Lout


def _pad_to(a, shape):
    out = np.zeros(shape, np.float32)
    out[:a.shape[0], :a.shape[1]] = a
    return out


# ----------------------------------------------------------------------------
# Static size arithmetic (valid convs, res='fixed')
# ----------------------------------------------------------------------------
def simulate_sizes(input_size, down_levels, up_levels, k_d, k_u, depth, stride):
    p = (RESAMPLE_K - 1) // 2
    L = input_size
    shortcuts = []
    for _ in range(down_levels):
        for _ in range(depth):
            L -= (k_d - 1)
            if L <= 0:
                return None
        shortcuts.append(L)
        if L <= p or L % stride != 1:
            return None
        L = (L - 1) // stride + 1
    for _ in range(depth):
        L -= (k_d - 1)
        if L <= 0:
            return None
    for i in range(up_levels):
        if L <= p:
            return None
        U = (L - 1) * stride + 1
        S = shortcuts[-1 - i]
        if S < U or (S - U) % 2 != 0:
            return None
        L = U
        for _ in range(depth):
            L -= (k_u - 1)
            if L <= 0:
                return None
    return L


def find_input_size(target_output, down_levels, up_levels, k_d, k_u, depth, stride):
    for inp in range(target_output, target_output + 4096):
        out = simulate_sizes(inp, down_levels, up_levels, k_d, k_u, depth, stride)
        if out is not None and out >= target_output and (inp - out) % 2 == 0:
            return inp, out
    raise ValueError("no valid input size found")


# ----------------------------------------------------------------------------
# Parameter init (PyTorch Conv1d default: U(+-1/sqrt(fan_in)))
# ----------------------------------------------------------------------------
def _init_conv(key, co, ci, k):
    kw, kb = jax.random.split(key)
    bound = 1.0 / math.sqrt(ci * k)
    w = jax.random.uniform(kw, (co, ci, k), jnp.float32, -bound, bound)
    b = jax.random.uniform(kb, (co,), jnp.float32, -bound, bound)
    return w, b


def init_waveunet_lyrics_params(key, num_inputs, num_channels, num_outputs,
                                kernel_size, depth):
    down_ch = num_channels[0]
    down_levels = len(down_ch) - 1
    up_levels = len(num_channels[1])
    k_d, k_u = kernel_size
    params = {"down": [], "bottlenecks": [], "up": []}
    for i in range(down_levels):
        in_ch = num_inputs if i == 0 else down_ch[i - 1]
        out_ch = down_ch[i]
        convs, cin = [], in_ch
        for _ in range(depth):
            key, sub = jax.random.split(key)
            convs.append(_init_conv(sub, out_ch, cin, k_d))
            cin = out_ch
        params["down"].append(convs)
    for _ in range(depth):
        key, sub = jax.random.split(key)
        params["bottlenecks"].append(_init_conv(sub, down_ch[-1], down_ch[-2], k_d))
    for i in range(up_levels):
        n_in = down_ch[-1 - i]
        n_short = down_ch[-2 - i]
        n_out = down_ch[-2 - i]
        convs, cin = [], n_in + n_short        # input channel order: [shortcut, upsampled]
        for _ in range(depth):
            key, sub = jax.random.split(key)
            convs.append(_init_conv(sub, n_out, cin, k_u))
            cin = n_out
        params["up"].append(convs)
    key, sub = jax.random.split(key)
    params["output_conv"] = _init_conv(sub, num_outputs, down_ch[-3], 1)
    return params


# ----------------------------------------------------------------------------
# Fused forward: one pallas_call for the whole network
# ----------------------------------------------------------------------------
def build_fused_waveunet_lyrics(params, strides, input_size, batch):
    filt = build_sinc_filter(RESAMPLE_K, 0.5 / strides)
    assert input_size <= LBUF

    # Batch elements packed per grid step.  Keep >= 2 grid steps so the
    # "parallel" grid axis still spreads work across both v7x TensorCores.
    BT = 2 if (batch % 2 == 0 and batch // 2 >= 2) else 1
    assert batch % BT == 0

    # ---- one packed lane-dense weight slab (bf16 at the end) ----------------
    blocks = []
    cursor = 0

    def add_packed(a):                         # a: 2D np.float32
        nonlocal cursor
        r, c = a.shape
        assert c <= WPAD
        rp = ((r + 15) // 16) * 16             # sublane-friendly row padding (bf16)
        blk = np.zeros((rp, WPAD), np.float32)
        blk[:r, :c] = a
        off = cursor
        cursor += rp
        blocks.append(blk)
        return off

    def add_conv(w, b, act, co_read=None):
        w = np.asarray(w, np.float32)
        b = np.asarray(b, np.float32)
        co, ci, k = w.shape
        # (Co, Ci, K) -> tap-major flat (Co, K*Ci), bias folded as last column.
        wf = np.concatenate(
            [np.transpose(w, (0, 2, 1)).reshape(co, k * ci), b.reshape(co, 1)],
            axis=1)
        if co_read is None:
            co_read = co
        if co_read > co:                       # zero rows -> zero logits (masked later)
            wf = np.concatenate(
                [wf, np.zeros((co_read - co, wf.shape[1]), np.float32)], axis=0)
        row = add_packed(wf)
        return {"row": row, "co": co_read, "K": k, "ci": ci, "act": act}

    # ---- static plan (all lengths / offsets are Python ints) ---------------
    down_plan, bott_plan, up_plan = [], [], []
    L = input_size
    shortcut_lens = []
    for convs in params["down"]:
        cdefs = []
        for (w, b) in convs:
            cd = add_conv(w, b, act=True)
            K = cd["K"]
            assert L <= LBUF and L - (K - 1) > 0        # conv only reads lanes [0, L)
            L -= (K - 1)
            cdefs.append(cd)
        shortcut_lens.append(L)
        R, Lnew = make_down_matrix(L, strides, filt)
        r_off = add_packed(_pad_to(R, (LBUF, LBUF)))    # zero rows kill garbage lanes
        down_plan.append({"convs": cdefs, "R": r_off})
        L = Lnew
        assert L <= LBUF

    for (w, b) in params["bottlenecks"]:
        cd = add_conv(w, b, act=True)
        assert L <= LBUF and L - (cd["K"] - 1) > 0
        L -= (cd["K"] - 1)
        bott_plan.append(cd)

    for i, convs in enumerate(params["up"]):
        R, U = make_up_matrix(L, strides, filt)
        r_off = add_packed(_pad_to(R, (LBUF, LBUF)))
        S = shortcut_lens[-1 - i]
        assert S >= U and (S - U) % 2 == 0 and U <= LBUF
        off = (S - U) // 2                     # crop(shortcut, upsampled) offset
        cdefs = []
        Lc = U
        for d, (w, b) in enumerate(convs):
            cd = add_conv(w, b, act=True)
            K = cd["K"]
            Lout = Lc - (K - 1)
            assert Lout > 0 and Lc <= LBUF
            if d == 0:
                # shortcut im2col window [off, off+Lc) must stay inside its valid data
                assert off + Lc <= S <= LBUF, "conv would read circular-roll garbage"
            cdefs.append(cd)
            Lc = Lout
        up_plan.append({"R": r_off, "short": len(shortcut_lens) - 1 - i,
                        "off": off, "convs": cdefs})
        L = Lc

    wo, bo = params["output_conv"]
    n_out = int(wo.shape[0])
    num_out_pad = ((n_out + 15) // 16) * 16    # 29 -> 32: unmasked output stores
    out_def = add_conv(wo, bo, act=False, co_read=num_out_pad)
    output_size = L
    assert output_size <= LBUF

    w_packed = jnp.asarray(np.concatenate(blocks, axis=0), jnp.bfloat16)

    # ---- kernel -------------------------------------------------------------
    def conv_apply(w_ref, parts_per_elem, cd, one_row):
        """parts_per_elem: per batch element, a list of (value (C, LBUF) f32,
        lane offset of its valid window).  One bf16 MXU matmul with N=BT*128;
        bias rides the matmul via the trailing ones-row / bias column."""
        K, ci, co, row = cd["K"], cd["ci"], cd["co"], cd["row"]
        width = K * ci + 1
        w = w_ref[pl.ds(row, co), pl.ds(0, width)]          # bf16 (co, K*ci+1)
        cols = []
        for parts in parts_per_elem:
            assert sum(p.shape[0] for (p, _) in parts) == ci
            rows = []
            for k in range(K):
                for (val, off) in parts:
                    sh = (-(off + k)) % LBUF                # non-negative, lanes shift left
                    rows.append(val if sh == 0 else pltpu.roll(val, shift=sh, axis=1))
            rows.append(one_row)                            # bias ones-row
            cols.append(jnp.concatenate(rows, axis=0))
        slab = cols[0] if len(cols) == 1 else jnp.concatenate(cols, axis=1)
        acc = jnp.dot(w, slab.astype(jnp.bfloat16),
                      preferred_element_type=jnp.float32)   # (co, BT*LBUF) f32
        if cd["act"]:
            acc = jnp.where(acc >= 0, acc, LEAKY_SLOPE * acc)
        return acc

    def split_elems(acc):
        return [acc[:, e * LBUF:(e + 1) * LBUF] for e in range(BT)]

    def apply_R(w_ref, outs, r_off):
        # fused reflect-pad + sinc filter + stride decimation / transposed conv + crop
        R = w_ref[pl.ds(r_off, LBUF), pl.ds(0, LBUF)]       # bf16 (LBUF, LBUF)
        return [jnp.dot(o.astype(jnp.bfloat16), R, preferred_element_type=jnp.float32)
                for o in outs]

    def kernel(x_ref, w_ref, o_ref):
        one_row = jnp.ones((1, LBUF), jnp.float32)
        outs = [x_ref[e] for e in range(BT)]                # each (num_inputs, LBUF) f32
        shortcuts = []
        # downsampling blocks
        for blk in down_plan:
            for cd in blk["convs"]:
                acc = conv_apply(w_ref, [[(o, 0)] for o in outs], cd, one_row)
                outs = split_elems(acc)
            shortcuts.append(outs)
            outs = apply_R(w_ref, outs, blk["R"])
        # bottleneck
        for cd in bott_plan:
            acc = conv_apply(w_ref, [[(o, 0)] for o in outs], cd, one_row)
            outs = split_elems(acc)
        # upsampling blocks
        for blk in up_plan:
            ups = apply_R(w_ref, outs, blk["R"])
            shorts = shortcuts[blk["short"]]
            for d, cd in enumerate(blk["convs"]):
                if d == 0:
                    # concat([crop(shortcut), upsampled]) folded into the im2col offsets
                    parts = [[(shorts[e], blk["off"]), (ups[e], 0)] for e in range(BT)]
                else:
                    # TODO(synk): reference UpsamplingBlock re-concats the upsampled
                    # tensor at every depth step, but its ConvLayer channel counts
                    # only type-check for depth == 1; depth == 1 is what we run.
                    parts = [[(o, 0)] for o in outs]
                acc = conv_apply(w_ref, parts, cd, one_row)
                outs = split_elems(acc)
        # 1x1 output conv (no activation) + stable log_softmax over the real channels
        acc = conv_apply(w_ref, [[(o, 0)] for o in outs], out_def, one_row)
        row_ids = jax.lax.broadcasted_iota(jnp.int32, acc.shape, 0)
        logits = jnp.where(row_ids < n_out, acc, -1e30)     # mask padded channels
        z = logits - jnp.max(logits, axis=0, keepdims=True)
        logp = z - jnp.log(jnp.sum(jnp.exp(z), axis=0, keepdims=True))
        for e in range(BT):
            o_ref[e] = logp[:, e * LBUF:(e + 1) * LBUF].astype(o_ref.dtype)

    def forward(x):
        B, cin, Lx = x.shape
        assert Lx == input_size and B % BT == 0
        # lane-dense input slab; all later padding/cropping lives inside the kernel
        xp = jnp.pad(x.astype(jnp.float32), ((0, 0), (0, 0), (0, LBUF - Lx)))
        out_padded = pl.pallas_call(
            kernel,
            out_shape=jax.ShapeDtypeStruct((B, num_out_pad, LBUF), jnp.float32),
            grid=(B // BT,),
            in_specs=[pl.BlockSpec((BT, cin, LBUF), lambda g: (g, 0, 0)),
                      pl.BlockSpec(w_packed.shape, lambda g: (0, 0))],
            out_specs=pl.BlockSpec((BT, num_out_pad, LBUF), lambda g: (g, 0, 0)),
            compiler_params=pltpu.CompilerParams(
                dimension_semantics=("parallel",),
                vmem_limit_bytes=64 * 1024 * 1024),
        )(xp, w_packed)
        return out_padded[:, :n_out, :output_size]

    return jax.jit(forward), output_size


# ----------------------------------------------------------------------------
# Pure numpy reference (mirrors the PyTorch forward) for validation
# ----------------------------------------------------------------------------
def _np_leaky(x):
    return np.where(x >= 0, x, LEAKY_SLOPE * x)


def _np_conv_valid(x, w, b):
    w = np.asarray(w, np.float64)
    b = np.asarray(b, np.float64)
    Co, Ci, K = w.shape
    Lout = x.shape[1] - K + 1
    y = np.zeros((Co, Lout), np.float64)
    for k in range(K):
        y += w[:, :, k] @ x[:, k:k + Lout]
    return y + b[:, None]


def _np_resample_down(x, filt, stride):
    C, L = x.shape
    K = len(filt)
    p = (K - 1) // 2
    xp = np.pad(x, ((0, 0), (p, p)), mode="reflect")
    Lout = (L - 1) // stride + 1
    y = np.zeros((C, Lout), np.float64)
    for j in range(Lout):
        y[:, j] = xp[:, j * stride: j * stride + K] @ filt
    return y


def _np_resample_up(x, filt, stride):
    C, L = x.shape
    K = len(filt)
    p = (K - 1) // 2
    xp = np.pad(x, ((0, 0), (p, p)), mode="reflect")
    Lp = xp.shape[1]
    full = np.zeros((C, (Lp - 1) * stride + K), np.float64)
    for j in range(Lp):
        full[:, j * stride: j * stride + K] += xp[:, j:j + 1] * filt[None, :]
    expected = (L - 1) * stride + 1
    c = (full.shape[1] - expected) // 2
    return full[:, c:c + expected]


def waveunet_lyrics_reference(x, params, strides):
    filt = build_sinc_filter(RESAMPLE_K, 0.5 / strides).astype(np.float64)
    x = np.asarray(x, np.float64)
    outs = []
    for bix in range(x.shape[0]):
        out = x[bix]
        shortcuts = []
        for convs in params["down"]:
            for (w, b) in convs:
                out = _np_leaky(_np_conv_valid(out, w, b))
            shortcuts.append(out)
            out = _np_resample_down(out, filt, strides)
        for (w, b) in params["bottlenecks"]:
            out = _np_leaky(_np_conv_valid(out, w, b))
        for i, convs in enumerate(params["up"]):
            up = _np_resample_up(out, filt, strides)
            short = shortcuts[-1 - i]
            c = (short.shape[1] - up.shape[1]) // 2
            combined = short[:, c:c + up.shape[1]]
            for d, (w, b) in enumerate(convs):
                inp = np.concatenate([combined, up], axis=0) if d == 0 else combined
                combined = _np_leaky(_np_conv_valid(inp, w, b))
            out = combined
        w, b = params["output_conv"]
        out = _np_conv_valid(out, w, b)
        z = out - out.max(axis=0, keepdims=True)
        outs.append(z - np.log(np.exp(z).sum(axis=0, keepdims=True)))
    return np.stack(outs).astype(np.float32)


# ----------------------------------------------------------------------------
if __name__ == "__main__":
    # Small self-consistent WaveunetLyrics config (res='fixed', conv_type='normal').
    num_inputs = 1                            # reference hardcodes 1-channel audio input
    num_channels = [[16, 16, 16], [16, 16]]   # [down-path channels, up-path channels]
    num_outputs = 29                          # {a..z, ', space, eps}
    kernel_size = [5, 5]                      # [f_D, f_U], both odd
    depth = 1
    strides = 2
    target_output = 25
    batch = 4                                 # packs 2 elems/step, grid stays 2 (v7x)

    down_levels = len(num_channels[0]) - 1
    up_levels = len(num_channels[1])
    input_size, output_size = find_input_size(
        target_output, down_levels, up_levels,
        kernel_size[0], kernel_size[1], depth, strides)
    assert (input_size - output_size) % 2 == 0

    key = jax.random.PRNGKey(0)
    key, pkey, xkey = jax.random.split(key, 3)
    params = init_waveunet_lyrics_params(pkey, num_inputs, num_channels,
                                         num_outputs, kernel_size, depth)
    forward, out_sz = build_fused_waveunet_lyrics(params, strides, input_size, batch)
    assert out_sz == output_size

    x = jax.random.normal(xkey, (batch, num_inputs, input_size), jnp.float32)
    out = forward(x)
    jax.block_until_ready(out)

    assert out.shape == (batch, num_outputs, output_size)
    out_np = np.asarray(out)
    assert np.all(np.isfinite(out_np))
    # log_softmax sanity: probabilities sum to 1 per (batch, frame)
    assert np.all(np.abs(np.exp(out_np).sum(axis=1) - 1.0) < 1e-3)
    # numerical check against the pure-numpy (f64) reference of the PyTorch
    # forward; tolerance accounts for bf16 MXU operands (f32 accumulation).
    ref = waveunet_lyrics_reference(x, params, strides)
    assert float(np.max(np.abs(out_np - ref))) < 1.5e-1
    print("KERNEL_OK")
</pallas_src>

<mosaic_0001>
module attributes {stable_mosaic.version = 11 : i64} {
  func.func @kernel(%arg0: i32, %arg1: memref<2x1x128xf32, #tpu.memory_space<vmem>>, %arg2: memref<624x256xbf16, #tpu.memory_space<vmem>>, %arg3: memref<2x32x128xf32, #tpu.memory_space<vmem>>) attributes {dimension_semantics = [#tpu.dimension_semantics<parallel>], iteration_bounds = array<i64: 2>, scalar_prefetch = 0 : i64, scratch_operands = 0 : i64, tpu.core_type = #tpu.core_type<tc>, window_params = [{transform_indices = @transform_0, window_bounds = array<i64: 2, 1, 128>}, {pipeline_mode = #tpu.pipeline_mode<synchronous>, transform_indices = @transform_1, window_bounds = array<i64: 624, 256>}, {transform_indices = @transform_2, window_bounds = array<i64: 2, 32, 128>}]} {
    %cst = arith.constant 1.000000e+00 : f32
    %0 = vector.broadcast %cst : f32 to vector<1x128xf32>
    %c0 = arith.constant 0 : index
    %c0_0 = arith.constant 0 : index
    %c0_1 = arith.constant 0 : index
    %1 = vector.load %arg1[%c0, %c0_0, %c0_1] : memref<2x1x128xf32, #tpu.memory_space<vmem>>, vector<1x1x128xf32>
    %2 = vector.shape_cast %1 : vector<1x1x128xf32> to vector<1x128xf32>
    %c1 = arith.constant 1 : index
    %c0_2 = arith.constant 0 : index
    %c0_3 = arith.constant 0 : index
    %3 = vector.load %arg1[%c1, %c0_2, %c0_3] : memref<2x1x128xf32, #tpu.memory_space<vmem>>, vector<1x1x128xf32>
    %4 = vector.shape_cast %3 : vector<1x1x128xf32> to vector<1x128xf32>
    %c0_4 = arith.constant 0 : index
    %c0_5 = arith.constant 0 : index
    %5 = vector.load %arg2[%c0_4, %c0_5] : memref<624x256xbf16, #tpu.memory_space<vmem>>, vector<16x6xbf16>
    %c127_i32 = arith.constant 127 : i32
    %6 = tpu.dynamic_rotate %2 by %c127_i32 dim 1 : vector<1x128xf32>, i32 -> vector<1x128xf32>
    %c126_i32 = arith.constant 126 : i32
    %7 = tpu.dynamic_rotate %2 by %c126_i32 dim 1 : vector<1x128xf32>, i32 -> vector<1x128xf32>
    %c125_i32 = arith.constant 125 : i32
    %8 = tpu.dynamic_rotate %2 by %c125_i32 dim 1 : vector<1x128xf32>, i32 -> vector<1x128xf32>
    %c124_i32 = arith.constant 124 : i32
    %9 = tpu.dynamic_rotate %2 by %c124_i32 dim 1 : vector<1x128xf32>, i32 -> vector<1x128xf32>
    %10 = tpu.concatenate %2, %6, %7, %8, %9, %0 in 0 : vector<1x128xf32>, vector<1x128xf32>, vector<1x128xf32>, vector<1x128xf32>, vector<1x128xf32>, vector<1x128xf32> -> vector<6x128xf32>
    %c127_i32_6 = arith.constant 127 : i32
    %11 = tpu.dynamic_rotate %4 by %c127_i32_6 dim 1 : vector<1x128xf32>, i32 -> vector<1x128xf32>
    %c126_i32_7 = arith.constant 126 : i32
    %12 = tpu.dynamic_rotate %4 by %c126_i32_7 dim 1 : vector<1x128xf32>, i32 -> vector<1x128xf32>
    %c125_i32_8 = arith.constant 125 : i32
    %13 = tpu.dynamic_rotate %4 by %c125_i32_8 dim 1 : vector<1x128xf32>, i32 -> vector<1x128xf32>
    %c124_i32_9 = arith.constant 124 : i32
    %14 = tpu.dynamic_rotate %4 by %c124_i32_9 dim 1 : vector<1x128xf32>, i32 -> vector<1x128xf32>
    %15 = tpu.concatenate %4, %11, %12, %13, %14, %0 in 0 : vector<1x128xf32>, vector<1x128xf32>, vector<1x128xf32>, vector<1x128xf32>, vector<1x128xf32>, vector<1x128xf32> -> vector<6x128xf32>
    %16 = tpu.concatenate %10, %15 in 1 : vector<6x128xf32>, vector<6x128xf32> -> vector<6x256xf32>
    %17 = arith.truncf %16 : vector<6x256xf32> to vector<6x256xbf16>
    %cst_10 = arith.constant dense<0.000000e+00> : vector<16x256xf32>
    %18 = tpu.matmul %5, %17, %cst_10 {dimension_numbers = #tpu.dot_dimension_numbers<[1], [0], [0], [1], [0, 0, 1, 1], [], []>} : vector<16x6xbf16>, vector<6x256xbf16>, vector<16x256xf32> -> vector<16x256xf32>
    %cst_11 = arith.constant 0.000000e+00 : f32
    %19 = vector.broadcast %cst_11 : f32 to vector<16x256xf32>
    %20 = arith.cmpf oge, %18, %19 : vector<16x256xf32>
    %cst_12 = arith.constant 0.00999999977 : f32
    %21 = vector.broadcast %cst_12 : f32 to vector<16x256xf32>
    %22 = arith.mulf %21, %18 : vector<16x256xf32>
    %23 = arith.select %20, %18, %22 : vector<16x256xi1>, vector<16x256xf32>
    %24 = vector.extract_strided_slice %23 {offsets = [0, 0], sizes = [16, 128], strides = [1, 1]} : vector<16x256xf32> to vector<16x128xf32>
    %25 = vector.extract_strided_slice %23 {offsets = [0, 128], sizes = [16, 128], strides = [1, 1]} : vector<16x256xf32> to vector<16x128xf32>
    %c16 = arith.constant 16 : index
    %c0_13 = arith.constant 0 : index
    %26 = vector.load %arg2[%c16, %c0_13] : memref<624x256xbf16, #tpu.memory_space<vmem>>, vector<128x128xbf16>
    %27 = arith.truncf %24 : vector<16x128xf32> to vector<16x128xbf16>
    %cst_14 = arith.constant dense<0.000000e+00> : vector<16x128xf32>
    %28 = tpu.matmul %27, %26, %cst_14 {dimension_numbers = #tpu.dot_dimension_numbers<[1], [0], [0], [1], [0, 0, 1, 1], [], []>} : vector<16x128xbf16>, vector<128x128xbf16>, vector<16x128xf32> -> vector<16x128xf32>
    %29 = arith.truncf %25 : vector<16x128xf32> to vector<16x128xbf16>
    %cst_15 = arith.constant dense<0.000000e+00> : vector<16x128xf32>
    %30 = tpu.matmul %29, %26, %cst_15 {dimension_numbers = #tpu.dot_dimension_numbers<[1], [0], [0], [1], [0, 0, 1, 1], [], []>} : vector<16x128xbf16>, vector<128x128xbf16>, vector<16x128xf32> -> vector<16x128xf32>
    %c144 = arith.constant 144 : index
    %c0_16 = arith.constant 0 : index
    %31 = vector.load %arg2[%c144, %c0_16] : memref<624x256xbf16, #tpu.memory_space<vmem>>, vector<16x81xbf16>
    %c127_i32_17 = arith.constant 127 : i32
    %32 = tpu.dynamic_rotate %28 by %c127_i32_17 dim 1 : vector<16x128xf32>, i32 -> vector<16x128xf32>
    %c126_i32_18 = arith.constant 126 : i32
    %33 = tpu.dynamic_rotate %28 by %c126_i32_18 dim 1 : vector<16x128xf32>, i32 -> vector<16x128xf32>
    %c125_i32_19 = arith.constant 125 : i32
    %34 = tpu.dynamic_rotate %28 by %c125_i32_19 dim 1 : vector<16x128xf32>, i32 -> vector<16x128xf32>
    %c124_i32_20 = arith.constant 124 : i32
    %35 = tpu.dynamic_rotate %28 by %c124_i32_20 dim 1 : vector<16x128xf32>, i32 -> vector<16x128xf32>
    %36 = tpu.concatenate %28, %32, %33, %34, %35, %0 in 0 : vector<16x128xf32>, vector<16x128xf32>, vector<16x128xf32>, vector<16x128xf32>, vector<16x128xf32>, vector<1x128xf32> -> vector<81x128xf32>
    %c127_i32_21 = arith.constant 127 : i32
    %37 = tpu.dynamic_rotate %30 by %c127_i32_21 dim 1 : vector<16x128xf32>, i32 -> vector<16x128xf32>
    %c126_i32_22 = arith.constant 126 : i32
    %38 = tpu.dynamic_rotate %30 by %c126_i32_22 dim 1 : vector<16x128xf32>, i32 -> vector<16x128xf32>
    %c125_i32_23 = arith.constant 125 : i32
    %39 = tpu.dynamic_rotate %30 by %c125_i32_23 dim 1 : vector<16x128xf32>, i32 -> vector<16x128xf32>
    %c124_i32_24 = arith.constant 124 : i32
    %40 = tpu.dynamic_rotate %30 by %c124_i32_24 dim 1 : vector<16x128xf32>, i32 -> vector<16x128xf32>
    %41 = tpu.concatenate %30, %37, %38, %39, %40, %0 in 0 : vector<16x128xf32>, vector<16x128xf32>, vector<16x128xf32>, vector<16x128xf32>, vector<16x128xf32>, vector<1x128xf32> -> vector<81x128xf32>
    %42 = tpu.concatenate %36, %41 in 1 : vector<81x128xf32>, vector<81x128xf32> -> vector<81x256xf32>
    %43 = arith.truncf %42 : vector<81x256xf32> to vector<81x256xbf16>
    %cst_25 = arith.constant dense<0.000000e+00> : vector<16x256xf32>
    %44 = tpu.matmul %31, %43, %cst_25 {dimension_numbers = #tpu.dot_dimension_numbers<[1], [0], [0], [1], [0, 0, 1, 1], [], []>} : vector<16x81xbf16>, vector<81x256xbf16>, vector<16x256xf32> -> vector<16x256xf32>
    %cst_26 = arith.constant 0.000000e+00 : f32
    %45 = vector.broadcast %cst_26 : f32 to vector<16x256xf32>
    %46 = arith.cmpf oge, %44, %45 : vector<16x256xf32>
    %cst_27 = arith.constant 0.00999999977 : f32
    %47 = vector.broadcast %cst_27 : f32 to vector<16x256xf32>
    %48 = arith.mulf %47, %44 : vector<16x256xf32>
    %49 = arith.select %46, %44, %48 : vector<16x256xi1>, vector<16x256xf32>
    %50 = vector.extract_strided_slice %49 {offsets = [0, 0], sizes = [16, 128], strides = [1, 1]} : vector<16x256xf32> to vector<16x128xf32>
    %51 = vector.extract_strided_slice %49 {offsets = [0, 128], sizes = [16, 128], strides = [1, 1]} : vector<16x256xf32> to vector<16x128xf32>
    %c160 = arith.constant 160 : index
    %c0_28 = arith.constant 0 : index
    %52 = vector.load %arg2[%c160, %c0_28] : memref<624x256xbf16, #tpu.memory_space<vmem>>, vector<128x128xbf16>
    %53 = arith.truncf %50 : vector<16x128xf32> to vector<16x128xbf16>
    %cst_29 = arith.constant dense<0.000000e+00> : vector<16x128xf32>
    %54 = tpu.matmul %53, %52, %cst_29 {dimension_numbers = #tpu.dot_dimension_numbers<[1], [0], [0], [1], [0, 0, 1, 1], [], []>} : vector<16x128xbf16>, vector<128x128xbf16>, vector<16x128xf32> -> vector<16x128xf32>
    %55 = arith.truncf %51 : vector<16x128xf32> to vector<16x128xbf16>
    %cst_30 = arith.constant dense<0.000000e+00> : vector<16x128xf32>
    %56 = tpu.matmul %55, %52, %cst_30 {dimension_numbers = #tpu.dot_dimension_numbers<[1], [0], [0], [1], [0, 0, 1, 1], [], []>} : vector<16x128xbf16>, vector<128x128xbf16>, vector<16x128xf32> -> vector<16x128xf32>
    %c288 = arith.constant 288 : index
    %c0_31 = arith.constant 0 : index
    %57 = vector.load %arg2[%c288, %c0_31] : memref<624x256xbf16, #tpu.memory_space<vmem>>, vector<16x81xbf16>
    %c127_i32_32 = arith.constant 127 : i32
    %58 = tpu.dynamic_rotate %54 by %c127_i32_32 dim 1 : vector<16x128xf32>, i32 -> vector<16x128xf32>
    %c126_i32_33 = arith.constant 126 : i32
    %59 = tpu.dynamic_rotate %54 by %c126_i32_33 dim 1 : vector<16x128xf32>, i32 -> vector<16x128xf32>
    %c125_i32_34 = arith.constant 125 : i32
    %60 = tpu.dynamic_rotate %54 by %c125_i32_34 dim 1 : vector<16x128xf32>, i32 -> vector<16x128xf32>
    %c124_i32_35 = arith.constant 124 : i32
    %61 = tpu.dynamic_rotate %54 by %c124_i32_35 dim 1 : vector<16x128xf32>, i32 -> vector<16x128xf32>
    %62 = tpu.concatenate %54, %58, %59, %60, %61, %0 in 0 : vector<16x128xf32>, vector<16x128xf32>, vector<16x128xf32>, vector<16x128xf32>, vector<16x128xf32>, vector<1x128xf32> -> vector<81x128xf32>
    %c127_i32_36 = arith.constant 127 : i32
    %63 = tpu.dynamic_rotate %56 by %c127_i32_36 dim 1 : vector<16x128xf32>, i32 -> vector<16x128xf32>
    %c126_i32_37 = arith.constant 126 : i32
    %64 = tpu.dynamic_rotate %56 by %c126_i32_37 dim 1 : vector<16x128xf32>, i32 -> vector<16x128xf32>
    %c125_i32_38 = arith.constant 125 : i32
    %65 = tpu.dynamic_rotate %56 by %c125_i32_38 dim 1 : vector<16x128xf32>, i32 -> vector<16x128xf32>
    %c124_i32_39 = arith.constant 124 : i32
    %66 = tpu.dynamic_rotate %56 by %c124_i32_39 dim 1 : vector<16x128xf32>, i32 -> vector<16x128xf32>
    %67 = tpu.concatenate %56, %63, %64, %65, %66, %0 in 0 : vector<16x128xf32>, vector<16x128xf32>, vector<16x128xf32>, vector<16x128xf32>, vector<16x128xf32>, vector<1x128xf32> -> vector<81x128xf32>
    %68 = tpu.concatenate %62, %67 in 1 : vector<81x128xf32>, vector<81x128xf32> -> vector<81x256xf32>
    %69 = arith.truncf %68 : vector<81x256xf32> to vector<81x256xbf16>
    %cst_40 = arith.constant dense<0.000000e+00> : vector<16x256xf32>
    %70 = tpu.matmul %57, %69, %cst_40 {dimension_numbers = #tpu.dot_dimension_numbers<[1], [0], [0], [1], [0, 0, 1, 1], [], []>} : vector<16x81xbf16>, vector<81x256xbf16>, vector<16x256xf32> -> vector<16x256xf32>
    %cst_41 = arith.constant 0.000000e+00 : f32
    %71 = vector.broadcast %cst_41 : f32 to vector<16x256xf32>
    %72 = arith.cmpf oge, %70, %71 : vector<16x256xf32>
    %cst_42 = arith.constant 0.00999999977 : f32
    %73 = vector.broadcast %cst_42 : f32 to vector<16x256xf32>
    %74 = arith.mulf %73, %70 : vector<16x256xf32>
    %75 = arith.select %72, %70, %74 : vector<16x256xi1>, vector<16x256xf32>
    %76 = vector.extract_strided_slice %75 {offsets = [0, 0], sizes = [16, 128], strides = [1, 1]} : vector<16x256xf32> to vector<16x128xf32>
    %77 = vector.extract_strided_slice %75 {offsets = [0, 128], sizes = [16, 128], strides = [1, 1]} : vector<16x256xf32> to vector<16x128xf32>
    %c304 = arith.constant 304 : index
    %c0_43 = arith.constant 0 : index
    %78 = vector.load %arg2[%c304, %c0_43] : memref<624x256xbf16, #tpu.memory_space<vmem>>, vector<128x128xbf16>
    %79 = arith.truncf %76 : vector<16x128xf32> to vector<16x128xbf16>
    %cst_44 = arith.constant dense<0.000000e+00> : vector<16x128xf32>
    %80 = tpu.matmul %79, %78, %cst_44 {dimension_numbers = #tpu.dot_dimension_numbers<[1], [0], [0], [1], [0, 0, 1, 1], [], []>} : vector<16x128xbf16>, vector<128x128xbf16>, vector<16x128xf32> -> vector<16x128xf32>
    %81 = arith.truncf %77 : vector<16x128xf32> to vector<16x128xbf16>
    %cst_45 = arith.constant dense<0.000000e+00> : vector<16x128xf32>
    %82 = tpu.matmul %81, %78, %cst_45 {dimension_numbers = #tpu.dot_dimension_numbers<[1], [0], [0], [1], [0, 0, 1, 1], [], []>} : vector<16x128xbf16>, vector<128x128xbf16>, vector<16x128xf32> -> vector<16x128xf32>
    %c432 = arith.constant 432 : index
    %c0_46 = arith.constant 0 : index
    %83 = vector.load %arg2[%c432, %c0_46] : memref<624x256xbf16, #tpu.memory_space<vmem>>, vector<16x161xbf16>
    %c124_i32_47 = arith.constant 124 : i32
    %84 = tpu.dynamic_rotate %50 by %c124_i32_47 dim 1 : vector<16x128xf32>, i32 -> vector<16x128xf32>
    %c123_i32 = arith.constant 123 : i32
    %85 = tpu.dynamic_rotate %50 by %c123_i32 dim 1 : vector<16x128xf32>, i32 -> vector<16x128xf32>
    %c127_i32_48 = arith.constant 127 : i32
    %86 = tpu.dynamic_rotate %80 by %c127_i32_48 dim 1 : vector<16x128xf32>, i32 -> vector<16x128xf32>
    %c122_i32 = arith.constant 122 : i32
    %87 = tpu.dynamic_rotate %50 by %c122_i32 dim 1 : vector<16x128xf32>, i32 -> vector<16x128xf32>
    %c126_i32_49 = arith.constant 126 : i32
    %88 = tpu.dynamic_rotate %80 by %c126_i32_49 dim 1 : vector<16x128xf32>, i32 -> vector<16x128xf32>
    %c121_i32 = arith.constant 121 : i32
    %89 = tpu.dynamic_rotate %50 by %c121_i32 dim 1 : vector<16x128xf32>, i32 -> vector<16x128xf32>
    %c125_i32_50 = arith.constant 125 : i32
    %90 = tpu.dynamic_rotate %80 by %c125_i32_50 dim 1 : vector<16x128xf32>, i32 -> vector<16x128xf32>
    %c120_i32 = arith.constant 120 : i32
    %91 = tpu.dynamic_rotate %50 by %c120_i32 dim 1 : vector<16x128xf32>, i32 -> vector<16x128xf32>
    %c124_i32_51 = arith.constant 124 : i32
    %92 = tpu.dynamic_rotate %80 by %c124_i32_51 dim 1 : vector<16x128xf32>, i32 -> vector<16x128xf32>
    %93 = tpu.concatenate %84, %80, %85, %86, %87, %88, %89, %90, %91, %92, %0 in 0 : vector<16x128xf32>, vector<16x128xf32>, vector<16x128xf32>, vector<16x128xf32>, vector<16x128xf32>, vector<16x128xf32>, vector<16x128xf32>, vector<16x128xf32>, vector<16x128xf32>, vector<16x128xf32>, vector<1x128xf32> -> vector<161x128xf32>
    %c124_i32_52 = arith.constant 124 : i32
    %94 = tpu.dynamic_rotate %51 by %c124_i32_52 dim 1 : vector<16x128xf32>, i32 -> vector<16x128xf32>
    %c123_i32_53 = arith.constant 123 : i32
    %95 = tpu.dynamic_rotate %51 by %c123_i32_53 dim 1 : vector<16x128xf32>, i32 -> vector<16x128xf32>
    %c127_i32_54 = arith.constant 127 : i32
    %96 = tpu.dynamic_rotate %82 by %c127_i32_54 dim 1 : vector<16x128xf32>, i32 -> vector<16x128xf32>
    %c122_i32_55 = arith.constant 122 : i32
    %97 = tpu.dynamic_rotate %51 by %c122_i32_55 dim 1 : vector<16x128xf32>, i32 -> vector<16x128xf32>
    %c126_i32_56 = arith.constant 126 : i32
    %98 = tpu.dynamic_rotate %82 by %c126_i32_56 dim 1 : vector<16x128xf32>, i32 -> vector<16x128xf32>
    %c121_i32_57 = arith.constant 121 : i32
    %99 = tpu.dynamic_rotate %51 by %c121_i32_57 dim 1 : vector<16x128xf32>, i32 -> vector<16x128xf32>
    %c125_i32_58 = arith.constant 125 : i32
    %100 = tpu.dynamic_rotate %82 by %c125_i32_58 dim 1 : vector<16x128xf32>, i32 -> vector<16x128xf32>
    %c120_i32_59 = arith.constant 120 : i32
    %101 = tpu.dynamic_rotate %51 by %c120_i32_59 dim 1 : vector<16x128xf32>, i32 -> vector<16x128xf32>
    %c124_i32_60 = arith.constant 124 : i32
    %102 = tpu.dynamic_rotate %82 by %c124_i32_60 dim 1 : vector<16x128xf32>, i32 -> vector<16x128xf32>
    %103 = tpu.concatenate %94, %82, %95, %96, %97, %98, %99, %100, %101, %102, %0 in 0 : vector<16x128xf32>, vector<16x128xf32>, vector<16x128xf32>, vector<16x128xf32>, vector<16x128xf32>, vector<16x128xf32>, vector<16x128xf32>, vector<16x128xf32>, vector<16x128xf32>, vector<16x128xf32>, vector<1x128xf32> -> vector<161x128xf32>
    %104 = tpu.concatenate %93, %103 in 1 : vector<161x128xf32>, vector<161x128xf32> -> vector<161x256xf32>
    %105 = arith.truncf %104 : vector<161x256xf32> to vector<161x256xbf16>
    %cst_61 = arith.constant dense<0.000000e+00> : vector<16x256xf32>
    %106 = tpu.matmul %83, %105, %cst_61 {dimension_numbers = #tpu.dot_dimension_numbers<[1], [0], [0], [1], [0, 0, 1, 1], [], []>} : vector<16x161xbf16>, vector<161x256xbf16>, vector<16x256xf32> -> vector<16x256xf32>
    %cst_62 = arith.constant 0.000000e+00 : f32
    %107 = vector.broadcast %cst_62 : f32 to vector<16x256xf32>
    %108 = arith.cmpf oge, %106, %107 : vector<16x256xf32>
    %cst_63 = arith.constant 0.00999999977 : f32
    %109 = vector.broadcast %cst_63 : f32 to vector<16x256xf32>
    %110 = arith.mulf %109, %106 : vector<16x256xf32>
    %111 = arith.select %108, %106, %110 : vector<16x256xi1>, vector<16x256xf32>
    %112 = vector.extract_strided_slice %111 {offsets = [0, 0], sizes = [16, 128], strides = [1, 1]} : vector<16x256xf32> to vector<16x128xf32>
    %113 = vector.extract_strided_slice %111 {offsets = [0, 128], sizes = [16, 128], strides = [1, 1]} : vector<16x256xf32> to vector<16x128xf32>
    %c448 = arith.constant 448 : index
    %c0_64 = arith.constant 0 : index
    %114 = vector.load %arg2[%c448, %c0_64] : memref<624x256xbf16, #tpu.memory_space<vmem>>, vector<128x128xbf16>
    %115 = arith.truncf %112 : vector<16x128xf32> to vector<16x128xbf16>
    %cst_65 = arith.constant dense<0.000000e+00> : vector<16x128xf32>
    %116 = tpu.matmul %115, %114, %cst_65 {dimension_numbers = #tpu.dot_dimension_numbers<[1], [0], [0], [1], [0, 0, 1, 1], [], []>} : vector<16x128xbf16>, vector<128x128xbf16>, vector<16x128xf32> -> vector<16x128xf32>
    %117 = arith.truncf %113 : vector<16x128xf32> to vector<16x128xbf16>
    %cst_66 = arith.constant dense<0.000000e+00> : vector<16x128xf32>
    %118 = tpu.matmul %117, %114, %cst_66 {dimension_numbers = #tpu.dot_dimension_numbers<[1], [0], [0], [1], [0, 0, 1, 1], [], []>} : vector<16x128xbf16>, vector<128x128xbf16>, vector<16x128xf32> -> vector<16x128xf32>
    %c576 = arith.constant 576 : index
    %c0_67 = arith.constant 0 : index
    %119 = vector.load %arg2[%c576, %c0_67] : memref<624x256xbf16, #tpu.memory_space<vmem>>, vector<16x161xbf16>
    %c112_i32 = arith.constant 112 : i32
    %120 = tpu.dynamic_rotate %24 by %c112_i32 dim 1 : vector<16x128xf32>, i32 -> vector<16x128xf32>
    %c111_i32 = arith.constant 111 : i32
    %121 = tpu.dynamic_rotate %24 by %c111_i32 dim 1 : vector<16x128xf32>, i32 -> vector<16x128xf32>
    %c127_i32_68 = arith.constant 127 : i32
    %122 = tpu.dynamic_rotate %116 by %c127_i32_68 dim 1 : vector<16x128xf32>, i32 -> vector<16x128xf32>
    %c110_i32 = arith.constant 110 : i32
    %123 = tpu.dynamic_rotate %24 by %c110_i32 dim 1 : vector<16x128xf32>, i32 -> vector<16x128xf32>
    %c126_i32_69 = arith.constant 126 : i32
    %124 = tpu.dynamic_rotate %116 by %c126_i32_69 dim 1 : vector<16x128xf32>, i32 -> vector<16x128xf32>
    %c109_i32 = arith.constant 109 : i32
    %125 = tpu.dynamic_rotate %24 by %c109_i32 dim 1 : vector<16x128xf32>, i32 -> vector<16x128xf32>
    %c125_i32_70 = arith.constant 125 : i32
    %126 = tpu.dynamic_rotate %116 by %c125_i32_70 dim 1 : vector<16x128xf32>, i32 -> vector<16x128xf32>
    %c108_i32 = arith.constant 108 : i32
    %127 = tpu.dynamic_rotate %24 by %c108_i32 dim 1 : vector<16x128xf32>, i32 -> vector<16x128xf32>
    %c124_i32_71 = arith.constant 124 : i32
    %128 = tpu.dynamic_rotate %116 by %c124_i32_71 dim 1 : vector<16x128xf32>, i32 -> vector<16x128xf32>
    %129 = tpu.concatenate %120, %116, %121, %122, %123, %124, %125, %126, %127, %128, %0 in 0 : vector<16x128xf32>, vector<16x128xf32>, vector<16x128xf32>, vector<16x128xf32>, vector<16x128xf32>, vector<16x128xf32>, vector<16x128xf32>, vector<16x128xf32>, vector<16x128xf32>, vector<16x128xf32>, vector<1x128xf32> -> vector<161x128xf32>
    %c112_i32_72 = arith.constant 112 : i32
    %130 = tpu.dynamic_rotate %25 by %c112_i32_72 dim 1 : vector<16x128xf32>, i32 -> vector<16x128xf32>
    %c111_i32_73 = arith.constant 111 : i32
    %131 = tpu.dynamic_rotate %25 by %c111_i32_73 dim 1 : vector<16x128xf32>, i32 -> vector<16x128xf32>
    %c127_i32_74 = arith.constant 127 : i32
    %132 = tpu.dynamic_rotate %118 by %c127_i32_74 dim 1 : vector<16x128xf32>, i32 -> vector<16x128xf32>
    %c110_i32_75 = arith.constant 110 : i32
    %133 = tpu.dynamic_rotate %25 by %c110_i32_75 dim 1 : vector<16x128xf32>, i32 -> vector<16x128xf32>
    %c126_i32_76 = arith.constant 126 : i32
    %134 = tpu.dynamic_rotate %118 by %c126_i32_76 dim 1 : vector<16x128xf32>, i32 -> vector<16x128xf32>
    %c109_i32_77 = arith.constant 109 : i32
    %135 = tpu.dynamic_rotate %25 by %c109_i32_77 dim 1 : vector<16x128xf32>, i32 -> vector<16x128xf32>
    %c125_i32_78 = arith.constant 125 : i32
    %136 = tpu.dynamic_rotate %118 by %c125_i32_78 dim 1 : vector<16x128xf32>, i32 -> vector<16x128xf32>
    %c108_i32_79 = arith.constant 108 : i32
    %137 = tpu.dynamic_rotate %25 by %c108_i32_79 dim 1 : vector<16x128xf32>, i32 -> vector<16x128xf32>
    %c124_i32_80 = arith.constant 124 : i32
    %138 = tpu.dynamic_rotate %118 by %c124_i32_80 dim 1 : vector<16x128xf32>, i32 -> vector<16x128xf32>
    %139 = tpu.concatenate %130, %118, %131, %132, %133, %134, %135, %136, %137, %138, %0 in 0 : vector<16x128xf32>, vector<16x128xf32>, vector<16x128xf32>, vector<16x128xf32>, vector<16x128xf32>, vector<16x128xf32>, vector<16x128xf32>, vector<16x128xf32>, vector<16x128xf32>, vector<16x128xf32>, vector<1x128xf32> -> vector<161x128xf32>
    %140 = tpu.concatenate %129, %139 in 1 : vector<161x128xf32>, vector<161x128xf32> -> vector<161x256xf32>
    %141 = arith.truncf %140 : vector<161x256xf32> to vector<161x256xbf16>
    %cst_81 = arith.constant dense<0.000000e+00> : vector<16x256xf32>
    %142 = tpu.matmul %119, %141, %cst_81 {dimension_numbers = #tpu.dot_dimension_numbers<[1], [0], [0], [1], [0, 0, 1, 1], [], []>} : vector<16x161xbf16>, vector<161x256xbf16>, vector<16x256xf32> -> vector<16x256xf32>
    %cst_82 = arith.constant 0.000000e+00 : f32
    %143 = vector.broadcast %cst_82 : f32 to vector<16x256xf32>
    %144 = arith.cmpf oge, %142, %143 : vector<16x256xf32>
    %cst_83 = arith.constant 0.00999999977 : f32
    %145 = vector.broadcast %cst_83 : f32 to vector<16x256xf32>
    %146 = arith.mulf %145, %142 : vector<16x256xf32>
    %147 = arith.select %144, %142, %146 : vector<16x256xi1>, vector<16x256xf32>
    %148 = vector.extract_strided_slice %147 {offsets = [0, 0], sizes = [16, 128], strides = [1, 1]} : vector<16x256xf32> to vector<16x128xf32>
    %149 = vector.extract_strided_slice %147 {offsets = [0, 128], sizes = [16, 128], strides = [1, 1]} : vector<16x256xf32> to vector<16x128xf32>
    %c592 = arith.constant 592 : index
    %c0_84 = arith.constant 0 : index
    %150 = vector.load %arg2[%c592, %c0_84] : memref<624x256xbf16, #tpu.memory_space<vmem>>, vector<32x17xbf16>
    %151 = tpu.concatenate %148, %0 in 0 : vector<16x128xf32>, vector<1x128xf32> -> vector<17x128xf32>
    %152 = tpu.concatenate %149, %0 in 0 : vector<16x128xf32>, vector<1x128xf32> -> vector<17x128xf32>
    %153 = tpu.concatenate %151, %152 in 1 : vector<17x128xf32>, vector<17x128xf32> -> vector<17x256xf32>
    %154 = arith.truncf %153 : vector<17x256xf32> to vector<17x256xbf16>
    %cst_85 = arith.constant dense<0.000000e+00> : vector<32x256xf32>
    %155 = tpu.matmul %150, %154, %cst_85 {dimension_numbers = #tpu.dot_dimension_numbers<[1], [0], [0], [1], [0, 0, 1, 1], [], []>} : vector<32x17xbf16>, vector<17x256xbf16>, vector<32x256xf32> -> vector<32x256xf32>
    %156 = tpu.iota {dimensions = array<i32: 0>} : vector<32x256xi32>
    %c29_i32 = arith.constant 29 : i32
    %157 = vector.broadcast %c29_i32 : i32 to vector<32x256xi32>
    %158 = arith.cmpi slt, %156, %157 : vector<32x256xi32>
    %cst_86 = arith.constant -1.000000e+30 : f32
    %159 = vector.broadcast %cst_86 : f32 to vector<32x256xf32>
    %160 = arith.select %158, %155, %159 : vector<32x256xi1>, vector<32x256xf32>
    %cst_87 = arith.constant dense<0xFF800000> : vector<256xf32>
    %161 = vector.multi_reduction <maximumf>, %160, %cst_87 [0] : vector<32x256xf32> to vector<256xf32>
    %162 = vector.shape_cast %161 : vector<256xf32> to vector<1x256xf32>
    %163 = vector.broadcast %162 : vector<1x256xf32> to vector<32x256xf32>
    %164 = arith.subf %160, %163 : vector<32x256xf32>
    %165 = math.exp %164 : vector<32x256xf32>
    %cst_88 = arith.constant dense<0.000000e+00> : vector<256xf32>
    %166 = vector.multi_reduction <add>, %165, %cst_88 [0] : vector<32x256xf32> to vector<256xf32>
    %167 = vector.shape_cast %166 : vector<256xf32> to vector<1x256xf32>
    %168 = math.log %167 : vector<1x256xf32>
    %169 = vector.broadcast %168 : vector<1x256xf32> to vector<32x256xf32>
    %170 = arith.subf %164, %169 : vector<32x256xf32>
    %171 = vector.extract_strided_slice %170 {offsets = [0, 0], sizes = [32, 128], strides = [1, 1]} : vector<32x256xf32> to vector<32x128xf32>
    %c0_89 = arith.constant 0 : index
    %c0_90 = arith.constant 0 : index
    %c0_91 = arith.constant 0 : index
    %172 = vector.load %arg3[%c0_89, %c0_90, %c0_91] : memref<2x32x128xf32, #tpu.memory_space<vmem>>, vector<1x32x128xf32>
    %173 = vector.shape_cast %172 : vector<1x32x128xf32> to vector<32x128xf32>
    %174 = vector.shape_cast %171 : vector<32x128xf32> to vector<1x32x128xf32>
    tpu.vector_store %arg3[%c0_89, %c0_90, %c0_91], %174 {strides = array<i32>} : memref<2x32x128xf32, #tpu.memory_space<vmem>>, vector<1x32x128xf32>,
    %175 = vector.extract_strided_slice %170 {offsets = [0, 128], sizes = [32, 128], strides = [1, 1]} : vector<32x256xf32> to vector<32x128xf32>
    %c1_92 = arith.constant 1 : index
    %c0_93 = arith.constant 0 : index
    %c0_94 = arith.constant 0 : index
    %176 = vector.load %arg3[%c1_92, %c0_93, %c0_94] : memref<2x32x128xf32, #tpu.memory_space<vmem>>, vector<1x32x128xf32>
    %177 = vector.shape_cast %176 : vector<1x32x128xf32> to vector<32x128xf32>
    %178 = vector.shape_cast %175 : vector<32x128xf32> to vector<1x32x128xf32>
    tpu.vector_store %arg3[%c1_92, %c0_93, %c0_94], %178 {strides = array<i32>} : memref<2x32x128xf32, #tpu.memory_space<vmem>>, vector<1x32x128xf32>,
    return
  }
  func.func @transform_0(%arg0: i32) -> (i32, i32, i32) {
    %c0_i32 = arith.constant 0 : i32
    %c0_i32_0 = arith.constant 0 : i32
    %c0_i32_1 = arith.constant 0 : i32
    return %arg0, %c0_i32, %c0_i32_0 : i32, i32, i32
  }
  func.func @transform_1(%arg0: i32) -> (i32, i32) {
    %c0_i32 = arith.constant 0 : i32
    %c0_i32_0 = arith.constant 0 : i32
    %c0_i32_1 = arith.constant 0 : i32
    return %c0_i32, %c0_i32_0 : i32, i32
  }
  func.func @transform_2(%arg0: i32) -> (i32, i32, i32) {
    %c0_i32 = arith.constant 0 : i32
    %c0_i32_0 = arith.constant 0 : i32
    %c0_i32_1 = arith.constant 0 : i32
    return %arg0, %c0_i32, %c0_i32_0 : i32, i32, i32
  }
}

</mosaic_0001>

<llo_original>
// kernel: forward.1
$region0: #{forward.1}
  #allocation0 [shape = 'u32[]', space=smem, size = 0x4, offset = 0x4, fixed_abs, tag = 'smem constant byte address 0x4 - core index']
  #allocation1 [shape = 'u32[144,128]{1,0:T(1,128)}', space=vmem, size = 0x12000, scoped, tag = 'internal scratch']
  %s0 = inlined_call_operand.vmem [shape: f32[4,1,128], index: 0, kind: input, shape index: {}]
  %s1 = inlined_call_operand.hbm [shape: bf16[624,256], index: 1, kind: input, shape index: {}]
  %s2 = inlined_call_operand.vmem [shape: f32[4,32,128], index: 2, kind: output, shape index: {}]
  %s3 = sld [smem:[#allocation0]]
  $region45: #{forward.1} parent=0
    _
  %s5 = ssub.s32 1, %s3
  %s6 = scalar_select 0, %s5, %s3
  $region1: #{forward.1} parent=0
    #allocation2 [shape = 'u8[319488]{0}', space=vmem, size = 0x4e000, scoped, tag = 'input window, operand 1, single buffered']
    #allocation3 [shape = 's32[2]{0}', space=sflag, size = 0x8, scoped, tag = 'scoped memory for forward.1']
    %7 = vsyncpa [#allocation3], 0
    loop: start=0, step=1, limit=4
    $region2: #{forward.1} parent=1 // loop_pre_header
      _
    $region3: #{forward.1} parent=1 // loop_header
      %s9 = sphi 0, %s13
      %p10 = scmp.ge.s32.totalorder %s9, 4
      %s19 = sphi 0, %s21
      %s22 = sphi 0, %s19
      %s23 = sphi 0, %s22
      %s39 = sphi 0, %s23
      %s43 = sphi 0, %s43
      %s45 = sphi 0, %s43
      %s46 = sphi 0, %s45
      %s60 = sphi 0, %s46
      %s66 = sphi 0, %s68
      %s69 = sphi 0, %s66
      %s70 = sphi 0, %s69
      %s86 = sphi 0, %s70
    $region4: #{forward.1} parent=1 // loop_header_branch
      %12 = sbr.rel (%p10) target = $region8
    $region5: #{forward.1} parent=1 // loop_body
      %s14 = ssub.s32 %s9, 1
      %s15 = ssub.s32 %s9, 2
      %s16 = sadd.s32 %s9, 1
      %s17 = ssub.s32 %s9, %s16
      %p18 = scmp.eq.s32.totalorder %s17, 0
      %s20 = sadd.s32 %s19, 1
      %s21 = scalar_select %p18, %s19, %s20
      %p24 = pneg %p18
      %p25 = scmp.eq.s32.totalorder %s9, 1
      %p26 = por %p24, %p25
      %p27 = scmp.ne.s32.totalorder %s19, %s22
      %p28 = scmp.eq.s32.totalorder %s9, 0
      %p29 = por %p27, %p28
      %p30 = scmp.ne.s32.totalorder %s19, %s22
      %p31 = scmp.eq.s32.totalorder %s14, 1
      %p32 = por %p30, %p31
      %p33 = scmp.ne.s32.totalorder %s22, %s23
      %p34 = scmp.eq.s32.totalorder %s14, 0
      %p35 = por %p33, %p34
      %p36 = scmp.ne.s32.totalorder %s22, %s23
      %p37 = scmp.eq.s32.totalorder %s15, 1
      %p38 = por %p36, %p37
      %p40 = scmp.ne.s32.totalorder %s23, %s39
      %p41 = scmp.eq.s32.totalorder %s15, 0
      %p42 = por %p40, %p41
      %s44 = sadd.s32 %s43, 1
      %p47 = scmp.eq.s32.totalorder %s9, 1
      %p48 = scmp.ne.s32.totalorder %s43, %s45
      %p49 = scmp.eq.s32.totalorder %s9, 0
      %p50 = por %p48, %p49
      %p51 = scmp.ne.s32.totalorder %s43, %s45
      %p52 = scmp.eq.s32.totalorder %s14, 1
      %p53 = por %p51, %p52
      %p54 = scmp.ne.s32.totalorder %s45, %s46
      %p55 = scmp.eq.s32.totalorder %s14, 0
      %p56 = por %p54, %p55
      %p57 = scmp.ne.s32.totalorder %s45, %s46
      %p58 = scmp.eq.s32.totalorder %s15, 1
      %p59 = por %p57, %p58
      %p61 = scmp.ne.s32.totalorder %s46, %s60
      %p62 = scmp.eq.s32.totalorder %s15, 0
      %p63 = por %p61, %p62
      %s64 = ssub.s32 %s9, %s16
      %p65 = scmp.eq.s32.totalorder %s64, 0
      %s67 = sadd.s32 %s66, 1
      %s68 = scalar_select %p65, %s66, %s67
      %p71 = pneg %p65
      %p72 = scmp.eq.s32.totalorder %s9, 1
      %p73 = por %p71, %p72
      %p74 = scmp.ne.s32.totalorder %s66, %s69
      %p75 = scmp.eq.s32.totalorder %s9, 0
      %p76 = por %p74, %p75
      %p77 = scmp.ne.s32.totalorder %s66, %s69
      %p78 = scmp.eq.s32.totalorder %s14, 1
      %p79 = por %p77, %p78
      %p80 = scmp.ne.s32.totalorder %s69, %s70
      %p81 = scmp.eq.s32.totalorder %s14, 0
      %p82 = por %p80, %p81
      %p83 = scmp.ne.s32.totalorder %s69, %s70
      %p84 = scmp.eq.s32.totalorder %s15, 1
      %p85 = por %p83, %p84
      %p87 = scmp.ne.s32.totalorder %s70, %s86
      %p88 = scmp.eq.s32.totalorder %s15, 0
      %p89 = por %p87, %p88
      %p90 = scmp.le.s32.totalorder 1, %s9
      %p91 = scmp.lt.s32.totalorder %s9, 3
      %p92 = pnand %p90, %p91
      %p93 = pneg %p92
      // Predicated region
      $region9: #{forward.1} parent=5 // pred_check
        _
      $region10: #{forward.1} parent=5 // pred_check_branch
        %95 = sbr.rel (%p92) target = $region12
      $region11: #{forward.1} parent=5 // pred_region
        %s96 = ssub.s32 %s9, 1
        // Predicated region
        $region13: #{forward.1} parent=11 // pred_check
          %p97 = pneg %p56
        $region14: #{forward.1} parent=11 // pred_check_branch
          %99 = sbr.rel (%p97) target = $region16
        $region15: #{forward.1} parent=11 // pred_region
          %s101 = ssub.s32 9984, 9984
          %102 = vsyncadd [#allocation3], %s101
          %s103 = sshll.u32 [#allocation2], 4
          %s104 = int_to_ptr.vmem [resolvable:$true] %s103
          %109 = dma.hbm_to_vmem [thread:$0]  %s1, 9984, %s104, [#allocation3], 128, 128, 8
        $region16: #{forward.1} parent=11 // pred_fallthru
          _
      $region12: #{forward.1} parent=5 // pred_fallthru
        _
      %p110 = scmp.lt.s32.totalorder %s9, 2
      // Predicated region
      $region17: #{forward.1} parent=5 // pred_check
        %p111 = pneg %p110
      $region18: #{forward.1} parent=5 // pred_check_branch
        %113 = sbr.rel (%p111) target = $region20
      $region19: #{forward.1} parent=5 // pred_region
        // Predicated region
        $region21: #{forward.1} parent=19 // pred_check
          %p114 = pneg %p29
        $region22: #{forward.1} parent=19 // pred_check_branch
          %116 = sbr.rel (%p114) target = $region24
        $region23: #{forward.1} parent=19 // pred_region
          %s117 = smul.u32 2, %s9
          %p118 = scmp.lt.s32.totalorder %s117, 3
          %s119 = scalar_select %p118, %s117, 3
          %s120 = scalar_lea.vmem %s0, %s119
          %s121 = smul.u32 2, %s9
        $region24: #{forward.1} parent=19 // pred_fallthru
          _
      $region20: #{forward.1} parent=5 // pred_fallthru
        _
      %p122 = scmp.le.s32.totalorder 1, %s9
      %p123 = scmp.lt.s32.totalorder %s9, 3
      %p124 = pnand %p122, %p123
      %p125 = pneg %p124
      // Predicated region
      $region25: #{forward.1} parent=5 // pred_check
        _
      $region26: #{forward.1} parent=5 // pred_check_branch
        %127 = sbr.rel (%p124) target = $region28
      $region27: #{forward.1} parent=5 // pred_region
        %s128 = ssub.s32 %s9, 1
        // Predicated region
        $region29: #{forward.1} parent=27 // pred_check
          %p129 = pneg %p56
        $region30: #{forward.1} parent=27 // pred_check_branch
          %131 = sbr.rel (%p129) target = $region32
        $region31: #{forward.1} parent=27 // pred_region
          %132 = dma.done [#allocation3], 9984
        $region32: #{forward.1} parent=27 // pred_fallthru
          _
        %s133 = smul.u32 2, %s14
        %p134 = scmp.lt.s32.totalorder %s133, 3
        %s135 = scalar_select %p134, %s133, 3
        %s136 = scalar_lea.vmem %s0, %s135
        %p137 = pneg %p35
        %p138 = pneg %p32
        %p139 = pneg %p56
        %p140 = pneg %p53
        %p141 = pneg %p82
        %p142 = pneg %p79
        %s143 = smul.u32 2, %s14
        %p144 = scmp.lt.s32.totalorder %s143, 3
        %s145 = scalar_select %p144, %s143, 3
        %s146 = smul.addr %s145, 4
        %s147 = smul.addr %s146, 8
        %s148 = scalar_lea.vmem %s2, %s147
        %s149 = smul.u32 2, %s14
        %p150 = scmp.lt.s32.totalorder %s149, 3
        %s151 = scalar_select %p150, %s149, 3
        %s152 = scalar_lea.vmem %s0, %s151
        %s153 = smul.u32 2, %s14
        %s154 = smul.u32 2, %s14
        %p155 = scmp.lt.s32.totalorder %s154, 3
        %s156 = scalar_select %p155, %s154, 3
        %s157 = smul.addr %s156, 4
        %s158 = smul.addr %s157, 8
        %s159 = scalar_lea.vmem %s2, %s158
        %s160 = smul.u32 2, %s14
        %v162 = vld [vmem:[%s152] sm:$0x1]
        %s163 = scalar_lea.vmem %s152, 1
        %v164 = vld [vmem:[%s163] sm:$0x1]
        %v165 = vld [vmem:[#allocation2] sm:$0xf]
        %v166 = vld [vmem:[#allocation2 + $0x8] sm:$0xf]
        %167 = vrot.lane.b32.xlu0 %v162, 127
        %v168 = vpop.permute.xlu0 %167
        %169 = vrot.lane.b32.xlu0 %v162, 126
        %v170 = vpop.permute.xlu0 %169
        %171 = vrot.lane.b32.xlu0 %v162, 125
        %v172 = vpop.permute.xlu0 %171
        %173 = vrot.lane.b32.xlu0 %v162, 124
        %v174 = vpop.permute.xlu0 %173
        %v176 = vrot.slane %v168, 7
        %v179 = vrot.slane %v170, 6
        %v182 = vrot.slane %v172, 5
        %v185 = vrot.slane %v174, 4
        %vm187 = vcmask 1040384
        %v188 = vsel %vm187, %v162, %v176
        %vm189 = vcmask 1041408
        %v190 = vsel %vm189, %v188, %v179
        %vm191 = vcmask 1042432
        %v192 = vsel %vm191, %v190, %v182
        %vm193 = vcmask 1043456
        %v194 = vsel %vm193, %v192, %v185
        %vm195 = vcmask 1044480
        %v196 = vsel %vm195, %v194, 1.0
        %197 = vrot.lane.b32.xlu0 %v164, 127
        %v198 = vpop.permute.xlu0 %197
        %199 = vrot.lane.b32.xlu0 %v164, 126
        %v200 = vpop.permute.xlu0 %199
        %201 = vrot.lane.b32.xlu0 %v164, 125
        %v202 = vpop.permute.xlu0 %201
        %203 = vrot.lane.b32.xlu0 %v164, 124
        %v204 = vpop.permute.xlu0 %203
        %v206 = vrot.slane %v198, 7
        %v209 = vrot.slane %v200, 6
        %v212 = vrot.slane %v202, 5
        %v215 = vrot.slane %v204, 4
        %v217 = vsel %vm187, %v164, %v206
        %v218 = vsel %vm189, %v217, %v209
        %v219 = vsel %vm191, %v218, %v212
        %v220 = vsel %vm193, %v219, %v215
        %v221 = vsel %vm195, %v220, 1.0
        %v222 = vpack.c.bf16 %v196, %v196
        %v223 = vpack.c.bf16 %v221, %v221
        %v226 = vunpack.c.l.b16 %v165
        %v227 = vunpack.c.l.b16 %v166
        %v228 = vpack.c.b16 %v227, %v226
        %vm229 = vcmask 48128
        %v231 = vsel %vm229, %v228, 0
        %v234 = vsel %vm191, %v222, 0
        %v237 = vsel %vm191, %v223, 0
        %239 = vmatprep.subr.bf16.mxu0 0
        %240 = vmatpush1.bf16.msra.mxu0 0
        %241 = vmatprep.subr.bf16.mxu0 0
        %242 = vmatpush1.bf16.msra.mxu0 0
        %243 = vmatprep.subr.bf16.mxu0 0
        %244 = vmatpush1.bf16.msra.mxu0 0
        %245 = vmatprep.subr.bf16.mxu0 0
        %246 = vmatpush1.bf16.msra.mxu0 0
        %247 = vmatprep.subr.bf16.mxu0 0
        %248 = vmatpush1.bf16.msra.mxu0 0
        %249 = vmatprep.subr.bf16.mxu0 0
        %250 = vmatpush1.bf16.msra.mxu0 0
        %251 = vmatprep.subr.bf16.mxu0 0
        %252 = vmatpush1.bf16.msra.mxu0 0
        %253 = vmatprep.subr.bf16.mxu0 %v237
        %254 = vmatpush1.bf16.msra.mxu0 %v234
        %255 = vmatprep.subr.bf16.mxu0 0
        %256 = vmatpush2.bf16.msra.mxu0 0
        %257 = vmatprep.subr.bf16.mxu0 0
        %258 = vmatpush2.bf16.msra.mxu0 0
        %259 = vmatprep.subr.bf16.mxu0 0
        %260 = vmatpush2.bf16.msra.mxu0 0
        %261 = vmatprep.subr.bf16.mxu0 0
        %262 = vmatpush2.bf16.msra.mxu0 0
        %263 = vmatprep.subr.bf16.mxu0 0
        %264 = vmatpush2.bf16.msra.mxu0 0
        %265 = vmatprep.subr.bf16.mxu0 0
        %266 = vmatpush2.bf16.msra.mxu0 0
        %267 = vmatprep.subr.bf16.mxu0 0
        %268 = vmatpush2.bf16.msra.mxu0 0
        %269 = vmatprep.subr.bf16.mxu0 0
        %270 = vmatpush2.bf16.msra.mxu0 0
        %271 = vmatprep.mubr.bf16.mxu0 0
        %272 = vmatmul.mubr.bf16.gmra.mxu0 %v231
        %v273 = vpop.f32.mrf.mxu0
        %v274 = vadd.f32 0.0, %v273
        %v275 = vpop.f32.mrf.mxu0
        %v276 = vadd.f32 0.0, %v275
        %v277 = vpop.f32.mrf.mxu0
        %v278 = vadd.f32 0.0, %v277
        %v279 = vpop.f32.mrf.mxu0
        %v280 = vadd.f32 0.0, %v279
        %281 = vdwg.mxu0
        %vm282 = vcmp.ge.f32.partialorder %v274, 0.0
        %vm283 = vcmp.ge.f32.partialorder %v276, 0.0
        %vm284 = vcmp.ge.f32.partialorder %v278, 0.0
        %vm285 = vcmp.ge.f32.partialorder %v280, 0.0
        %v286 = vmul.f32 %v274, 0.01
        %v287 = vmul.f32 %v276, 0.01
        %v288 = vmul.f32 %v278, 0.01
        %v289 = vmul.f32 %v280, 0.01
        %v290 = vsel %vm282, %v274, %v286
        %v291 = vsel %vm283, %v276, %v287
        %v292 = vsel %vm284, %v278, %v288
        %v293 = vsel %vm285, %v280, %v289
        %v294 = vld [vmem:[#allocation2 + $0x10] sm:$0xf]
        %v295 = vld [vmem:[#allocation2 + $0x18] sm:$0xf]
        %v296 = vld [vmem:[#allocation2 + $0x20] sm:$0xf]
        %v297 = vld [vmem:[#allocation2 + $0x28] sm:$0xf]
        %v298 = vld [vmem:[#allocation2 + $0x30] sm:$0xf]
        %v299 = vld [vmem:[#allocation2 + $0x38] sm:$0xf]
        %v300 = vld [vmem:[#allocation2 + $0x40] sm:$0xf]
        %v301 = vld [vmem:[#allocation2 + $0x48] sm:$0xf]
        %v302 = vld [vmem:[#allocation2 + $0x50] sm:$0xf]
        %v303 = vld [vmem:[#allocation2 + $0x58] sm:$0xf]
        %v304 = vld [vmem:[#allocation2 + $0x60] sm:$0xf]
        %v305 = vld [vmem:[#allocation2 + $0x68] sm:$0xf]
        %v306 = vld [vmem:[#allocation2 + $0x70] sm:$0xf]
        %v307 = vld [vmem:[#allocation2 + $0x78] sm:$0xf]
        %v308 = vld [vmem:[#allocation2 + $0x80] sm:$0xf]
        %v309 = vld [vmem:[#allocation2 + $0x88] sm:$0xf]
        %v310 = vpack.c.bf16 %v292, %v290
        %v327 = vunpack.c.l.b16 %v294
        %v328 = vunpack.c.l.b16 %v295
        %v329 = vunpack.c.l.b16 %v296
        %v330 = vunpack.c.l.b16 %v297
        %v331 = vunpack.c.l.b16 %v298
        %v332 = vunpack.c.l.b16 %v299
        %v333 = vunpack.c.l.b16 %v300
        %v334 = vunpack.c.l.b16 %v301
        %v335 = vunpack.c.l.b16 %v302
        %v336 = vunpack.c.l.b16 %v303
        %v337 = vunpack.c.l.b16 %v304
        %v338 = vunpack.c.l.b16 %v305
        %v339 = vunpack.c.l.b16 %v306
        %v340 = vunpack.c.l.b16 %v307
        %v341 = vunpack.c.l.b16 %v308
        %v342 = vunpack.c.l.b16 %v309
        %v343 = vpack.c.b16 %v328, %v327
        %v344 = vpack.c.b16 %v330, %v329
        %v345 = vpack.c.b16 %v332, %v331
        %v346 = vpack.c.b16 %v334, %v333
        %v347 = vpack.c.b16 %v336, %v335
        %v348 = vpack.c.b16 %v338, %v337
        %v349 = vpack.c.b16 %v340, %v339
        %v350 = vpack.c.b16 %v342, %v341
        %359 = vmatprep.subr.bf16.mxu0 0
        %360 = vmatpush1.bf16.msra.mxu0 %v350
        %361 = vmatprep.subr.bf16.mxu0 0
        %362 = vmatpush1.bf16.msra.mxu0 %v349
        %363 = vmatprep.subr.bf16.mxu0 0
        %364 = vmatpush1.bf16.msra.mxu0 %v348
        %365 = vmatprep.subr.bf16.mxu0 0
        %366 = vmatpush1.bf16.msra.mxu0 %v347
        %367 = vmatprep.subr.bf16.mxu0 0
        %368 = vmatpush1.bf16.msra.mxu0 %v346
        %369 = vmatprep.subr.bf16.mxu0 0
        %370 = vmatpush1.bf16.msra.mxu0 %v345
        %371 = vmatprep.subr.bf16.mxu0 0
        %372 = vmatpush1.bf16.msra.mxu0 %v344
        %373 = vmatprep.subr.bf16.mxu0 0
        %374 = vmatpush1.bf16.msra.mxu0 %v343
        %375 = vmatprep.subr.bf16.mxu0 0
        %376 = vmatpush2.bf16.msra.mxu0 0
        %377 = vmatprep.subr.bf16.mxu0 0
        %378 = vmatpush2.bf16.msra.mxu0 0
        %379 = vmatprep.subr.bf16.mxu0 0
        %380 = vmatpush2.bf16.msra.mxu0 0
        %381 = vmatprep.subr.bf16.mxu0 0
        %382 = vmatpush2.bf16.msra.mxu0 0
        %383 = vmatprep.subr.bf16.mxu0 0
        %384 = vmatpush2.bf16.msra.mxu0 0
        %385 = vmatprep.subr.bf16.mxu0 0
        %386 = vmatpush2.bf16.msra.mxu0 0
        %387 = vmatprep.subr.bf16.mxu0 0
        %388 = vmatpush2.bf16.msra.mxu0 0
        %389 = vmatprep.subr.bf16.mxu0 0
        %390 = vmatpush2.bf16.msra.mxu0 0
        %391 = vmatprep.mubr.bf16.mxu0 0
        %392 = vmatmul.mubr.bf16.gmra.mxu0 %v310
        %v393 = vpop.f32.mrf.mxu0
        %v394 = vadd.f32 0.0, %v393
        %v395 = vpop.f32.mrf.mxu0
        %v396 = vpop.f32.mrf.mxu0
        %v397 = vadd.f32 0.0, %v396
        %v398 = vpop.f32.mrf.mxu0
        %399 = vdwg.mxu0
        %v400 = vpack.c.bf16 %v293, %v291
        %401 = vmatprep.subr.bf16.mxu0 0
        %402 = vmatpush1.bf16.msra.mxu0 %v350
        %403 = vmatprep.subr.bf16.mxu0 0
        %404 = vmatpush1.bf16.msra.mxu0 %v349
        %405 = vmatprep.subr.bf16.mxu0 0
        %406 = vmatpush1.bf16.msra.mxu0 %v348
        %407 = vmatprep.subr.bf16.mxu0 0
        %408 = vmatpush1.bf16.msra.mxu0 %v347
        %409 = vmatprep.subr.bf16.mxu0 0
        %410 = vmatpush1.bf16.msra.mxu0 %v346
        %411 = vmatprep.subr.bf16.mxu0 0
        %412 = vmatpush1.bf16.msra.mxu0 %v345
        %413 = vmatprep.subr.bf16.mxu0 0
        %414 = vmatpush1.bf16.msra.mxu0 %v344
        %415 = vmatprep.subr.bf16.mxu0 0
        %416 = vmatpush1.bf16.msra.mxu0 %v343
        %417 = vmatprep.subr.bf16.mxu0 0
        %418 = vmatpush2.bf16.msra.mxu0 0
        %419 = vmatprep.subr.bf16.mxu0 0
        %420 = vmatpush2.bf16.msra.mxu0 0
        %421 = vmatprep.subr.bf16.mxu0 0
        %422 = vmatpush2.bf16.msra.mxu0 0
        %423 = vmatprep.subr.bf16.mxu0 0
        %424 = vmatpush2.bf16.msra.mxu0 0
        %425 = vmatprep.subr.bf16.mxu0 0
        %426 = vmatpush2.bf16.msra.mxu0 0
        %427 = vmatprep.subr.bf16.mxu0 0
        %428 = vmatpush2.bf16.msra.mxu0 0
        %429 = vmatprep.subr.bf16.mxu0 0
        %430 = vmatpush2.bf16.msra.mxu0 0
        %431 = vmatprep.subr.bf16.mxu0 0
        %432 = vmatpush2.bf16.msra.mxu0 0
        %433 = vmatprep.mubr.bf16.mxu0 0
        %434 = vmatmul.mubr.bf16.gmra.mxu0 %v400
        %v435 = vpop.f32.mrf.mxu0
        %v436 = vadd.f32 0.0, %v435
        %v437 = vpop.f32.mrf.mxu0
        %v438 = vpop.f32.mrf.mxu0
        %v439 = vadd.f32 0.0, %v438
        %v440 = vpop.f32.mrf.mxu0
        %441 = vdwg.mxu0
        %v442 = vld [vmem:[#allocation2 + $0x90] sm:$0xf]
        %v443 = vld [vmem:[#allocation2 + $0x98] sm:$0xf]
        %444 = vrot.lane.b32.xlu0 %v394, 127
        %v445 = vpop.permute.xlu0 %444
        %446 = vrot.lane.b32.xlu0 %v397, 127
        %v447 = vpop.permute.xlu0 %446
        %448 = vrot.lane.b32.xlu0 %v394, 126
        %v449 = vpop.permute.xlu0 %448
        %450 = vrot.lane.b32.xlu0 %v397, 126
        %v451 = vpop.permute.xlu0 %450
        %452 = vrot.lane.b32.xlu0 %v394, 125
        %v453 = vpop.permute.xlu0 %452
        %454 = vrot.lane.b32.xlu0 %v397, 125
        %v455 = vpop.permute.xlu0 %454
        %456 = vrot.lane.b32.xlu0 %v394, 124
        %v457 = vpop.permute.xlu0 %456
        %458 = vrot.lane.b32.xlu0 %v397, 124
        %v459 = vpop.permute.xlu0 %458
        %460 = vrot.lane.b32.xlu0 %v436, 127
        %v461 = vpop.permute.xlu0 %460
        %462 = vrot.lane.b32.xlu0 %v439, 127
        %v463 = vpop.permute.xlu0 %462
        %464 = vrot.lane.b32.xlu0 %v436, 126
        %v465 = vpop.permute.xlu0 %464
        %466 = vrot.lane.b32.xlu0 %v439, 126
        %v467 = vpop.permute.xlu0 %466
        %468 = vrot.lane.b32.xlu0 %v436, 125
        %v469 = vpop.permute.xlu0 %468
        %470 = vrot.lane.b32.xlu0 %v439, 125
        %v471 = vpop.permute.xlu0 %470
        %472 = vrot.lane.b32.xlu0 %v436, 124
        %v473 = vpop.permute.xlu0 %472
        %474 = vrot.lane.b32.xlu0 %v439, 124
        %v475 = vpop.permute.xlu0 %474
        %v476 = vpack.c.bf16 %v397, %v394
        %v477 = vpack.c.bf16 %v439, %v436
        %v478 = vpack.c.bf16 %v447, %v445
        %v479 = vpack.c.bf16 %v463, %v461
        %v480 = vpack.c.bf16 %v451, %v449
        %v481 = vpack.c.bf16 %v467, %v465
        %v482 = vpack.c.bf16 %v455, %v453
        %v483 = vpack.c.bf16 %v471, %v469
        %v484 = vpack.c.bf16 %v459, %v457
        %v485 = vpack.c.bf16 %v475, %v473
        %v486 = vpack.c.bf16 1.0, 1.0
        %v489 = vunpack.c.l.b16 %v442
        %v490 = vunpack.c.l.b16 %v443
        %v491 = vpack.c.b16 %v490, %v489
        %vm492 = vcmask 662528
        %v494 = vsel %vm492, %v491, 0
        %v496 = vsel 0, 4294967295, 65535
        %v497 = vsel %vm187, %v496, 0
        %v499 = vand.u32 %v486, %v497
        %501 = vmatprep.subr.bf16.mxu0 0
        %502 = vmatpush1.bf16.msra.mxu0 0
        %503 = vmatprep.subr.bf16.mxu0 0
        %504 = vmatpush1.bf16.msra.mxu0 0
        %505 = vmatprep.subr.bf16.mxu0 %v499
        %506 = vmatpush1.bf16.msra.mxu0 %v499
        %507 = vmatprep.subr.bf16.mxu0 %v485
        %508 = vmatpush1.bf16.msra.mxu0 %v484
        %509 = vmatprep.subr.bf16.mxu0 %v483
        %510 = vmatpush1.bf16.msra.mxu0 %v482
        %511 = vmatprep.subr.bf16.mxu0 %v481
        %512 = vmatpush1.bf16.msra.mxu0 %v480
        %513 = vmatprep.subr.bf16.mxu0 %v479
        %514 = vmatpush1.bf16.msra.mxu0 %v478
        %515 = vmatprep.subr.bf16.mxu0 %v477
        %516 = vmatpush1.bf16.msra.mxu0 %v476
        %517 = vmatprep.subr.bf16.mxu0 0
        %518 = vmatpush2.bf16.msra.mxu0 0
        %519 = vmatprep.subr.bf16.mxu0 0
        %520 = vmatpush2.bf16.msra.mxu0 0
        %521 = vmatprep.subr.bf16.mxu0 0
        %522 = vmatpush2.bf16.msra.mxu0 0
        %523 = vmatprep.subr.bf16.mxu0 0
        %524 = vmatpush2.bf16.msra.mxu0 0
        %525 = vmatprep.subr.bf16.mxu0 0
        %526 = vmatpush2.bf16.msra.mxu0 0
        %527 = vmatprep.subr.bf16.mxu0 0
        %528 = vmatpush2.bf16.msra.mxu0 0
        %529 = vmatprep.subr.bf16.mxu0 0
        %530 = vmatpush2.bf16.msra.mxu0 0
        %531 = vmatprep.subr.bf16.mxu0 0
        %532 = vmatpush2.bf16.msra.mxu0 0
        %533 = vmatprep.mubr.bf16.mxu0 0
        %534 = vmatmul.mubr.bf16.gmra.mxu0 %v494
        %v535 = vpop.f32.mrf.mxu0
        %v536 = vadd.f32 0.0, %v535
        %v537 = vpop.f32.mrf.mxu0
        %v538 = vadd.f32 0.0, %v537
        %v539 = vpop.f32.mrf.mxu0
        %v540 = vadd.f32 0.0, %v539
        %v541 = vpop.f32.mrf.mxu0
        %v542 = vadd.f32 0.0, %v541
        %543 = vdwg.mxu0
        %vm544 = vcmp.ge.f32.partialorder %v536, 0.0
        %vm545 = vcmp.ge.f32.partialorder %v538, 0.0
        %vm546 = vcmp.ge.f32.partialorder %v540, 0.0
        %vm547 = vcmp.ge.f32.partialorder %v542, 0.0
        %v548 = vmul.f32 %v536, 0.01
        %v549 = vmul.f32 %v538, 0.01
        %v550 = vmul.f32 %v540, 0.01
        %v551 = vmul.f32 %v542, 0.01
        %v552 = vsel %vm544, %v536, %v548
        %v553 = vsel %vm545, %v538, %v549
        %v554 = vsel %vm546, %v540, %v550
        %v555 = vsel %vm547, %v542, %v551
        %v556 = vld [vmem:[#allocation2 + $0xa0] sm:$0xf]
        %v557 = vld [vmem:[#allocation2 + $0xa8] sm:$0xf]
        %v558 = vld [vmem:[#allocation2 + $0xb0] sm:$0xf]
        %v559 = vld [vmem:[#allocation2 + $0xb8] sm:$0xf]
        %v560 = vld [vmem:[#allocation2 + $0xc0] sm:$0xf]
        %v561 = vld [vmem:[#allocation2 + $0xc8] sm:$0xf]
        %v562 = vld [vmem:[#allocation2 + $0xd0] sm:$0xf]
        %v563 = vld [vmem:[#allocation2 + $0xd8] sm:$0xf]
        %v564 = vld [vmem:[#allocation2 + $0xe0] sm:$0xf]
        %v565 = vld [vmem:[#allocation2 + $0xe8] sm:$0xf]
        %v566 = vld [vmem:[#allocation2 + $0xf0] sm:$0xf]
        %v567 = vld [vmem:[#allocation2 + $0xf8] sm:$0xf]
        %v568 = vld [vmem:[#allocation2 + $0x100] sm:$0xf]
        %v569 = vld [vmem:[#allocation2 + $0x108] sm:$0xf]
        %v570 = vld [vmem:[#allocation2 + $0x110] sm:$0xf]
        %v571 = vld [vmem:[#allocation2 + $0x118] sm:$0xf]
        %v572 = vpack.c.bf16 %v554, %v552
        %v589 = vunpack.c.l.b16 %v556
        %v590 = vunpack.c.l.b16 %v557
        %v591 = vunpack.c.l.b16 %v558
        %v592 = vunpack.c.l.b16 %v559
        %v593 = vunpack.c.l.b16 %v560
        %v594 = vunpack.c.l.b16 %v561
        %v595 = vunpack.c.l.b16 %v562
        %v596 = vunpack.c.l.b16 %v563
        %v597 = vunpack.c.l.b16 %v564
        %v598 = vunpack.c.l.b16 %v565
        %v599 = vunpack.c.l.b16 %v566
        %v600 = vunpack.c.l.b16 %v567
        %v601 = vunpack.c.l.b16 %v568
        %v602 = vunpack.c.l.b16 %v569
        %v603 = vunpack.c.l.b16 %v570
        %v604 = vunpack.c.l.b16 %v571
        %v605 = vpack.c.b16 %v590, %v589
        %v606 = vpack.c.b16 %v592, %v591
        %v607 = vpack.c.b16 %v594, %v593
        %v608 = vpack.c.b16 %v596, %v595
        %v609 = vpack.c.b16 %v598, %v597
        %v610 = vpack.c.b16 %v600, %v599
        %v611 = vpack.c.b16 %v602, %v601
        %v612 = vpack.c.b16 %v604, %v603
        %621 = vmatprep.subr.bf16.mxu0 0
        %622 = vmatpush1.bf16.msra.mxu0 %v612
        %623 = vmatprep.subr.bf16.mxu0 0
        %624 = vmatpush1.bf16.msra.mxu0 %v611
        %625 = vmatprep.subr.bf16.mxu0 0
        %626 = vmatpush1.bf16.msra.mxu0 %v610
        %627 = vmatprep.subr.bf16.mxu0 0
        %628 = vmatpush1.bf16.msra.mxu0 %v609
        %629 = vmatprep.subr.bf16.mxu0 0
        %630 = vmatpush1.bf16.msra.mxu0 %v608
        %631 = vmatprep.subr.bf16.mxu0 0
        %632 = vmatpush1.bf16.msra.mxu0 %v607
        %633 = vmatprep.subr.bf16.mxu0 0
        %634 = vmatpush1.bf16.msra.mxu0 %v606
        %635 = vmatprep.subr.bf16.mxu0 0
        %636 = vmatpush1.bf16.msra.mxu0 %v605
        %637 = vmatprep.subr.bf16.mxu0 0
        %638 = vmatpush2.bf16.msra.mxu0 0
        %639 = vmatprep.subr.bf16.mxu0 0
        %640 = vmatpush2.bf16.msra.mxu0 0
        %641 = vmatprep.subr.bf16.mxu0 0
        %642 = vmatpush2.bf16.msra.mxu0 0
        %643 = vmatprep.subr.bf16.mxu0 0
        %644 = vmatpush2.bf16.msra.mxu0 0
        %645 = vmatprep.subr.bf16.mxu0 0
        %646 = vmatpush2.bf16.msra.mxu0 0
        %647 = vmatprep.subr.bf16.mxu0 0
        %648 = vmatpush2.bf16.msra.mxu0 0
        %649 = vmatprep.subr.bf16.mxu0 0
        %650 = vmatpush2.bf16.msra.mxu0 0
        %651 = vmatprep.subr.bf16.mxu0 0
        %652 = vmatpush2.bf16.msra.mxu0 0
        %653 = vmatprep.mubr.bf16.mxu0 0
        %654 = vmatmul.mubr.bf16.gmra.mxu0 %v572
        %v655 = vpop.f32.mrf.mxu0
        %v656 = vadd.f32 0.0, %v655
        %v657 = vpop.f32.mrf.mxu0
        %v658 = vpop.f32.mrf.mxu0
        %v659 = vadd.f32 0.0, %v658
        %v660 = vpop.f32.mrf.mxu0
        %661 = vdwg.mxu0
        %v662 = vpack.c.bf16 %v555, %v553
        %663 = vmatprep.subr.bf16.mxu0 0
        %664 = vmatpush1.bf16.msra.mxu0 %v612
        %665 = vmatprep.subr.bf16.mxu0 0
        %666 = vmatpush1.bf16.msra.mxu0 %v611
        %667 = vmatprep.subr.bf16.mxu0 0
        %668 = vmatpush1.bf16.msra.mxu0 %v610
        %669 = vmatprep.subr.bf16.mxu0 0
        %670 = vmatpush1.bf16.msra.mxu0 %v609
        %671 = vmatprep.subr.bf16.mxu0 0
        %672 = vmatpush1.bf16.msra.mxu0 %v608
        %673 = vmatprep.subr.bf16.mxu0 0
        %674 = vmatpush1.bf16.msra.mxu0 %v607
        %675 = vmatprep.subr.bf16.mxu0 0
        %676 = vmatpush1.bf16.msra.mxu0 %v606
        %677 = vmatprep.subr.bf16.mxu0 0
        %678 = vmatpush1.bf16.msra.mxu0 %v605
        %679 = vmatprep.subr.bf16.mxu0 0
        %680 = vmatpush2.bf16.msra.mxu0 0
        %681 = vmatprep.subr.bf16.mxu0 0
        %682 = vmatpush2.bf16.msra.mxu0 0
        %683 = vmatprep.subr.bf16.mxu0 0
        %684 = vmatpush2.bf16.msra.mxu0 0
        %685 = vmatprep.subr.bf16.mxu0 0
        %686 = vmatpush2.bf16.msra.mxu0 0
        %687 = vmatprep.subr.bf16.mxu0 0
        %688 = vmatpush2.bf16.msra.mxu0 0
        %689 = vmatprep.subr.bf16.mxu0 0
        %690 = vmatpush2.bf16.msra.mxu0 0
        %691 = vmatprep.subr.bf16.mxu0 0
        %692 = vmatpush2.bf16.msra.mxu0 0
        %693 = vmatprep.subr.bf16.mxu0 0
        %694 = vmatpush2.bf16.msra.mxu0 0
        %695 = vmatprep.mubr.bf16.mxu0 0
        %696 = vmatmul.mubr.bf16.gmra.mxu0 %v662
        %v697 = vpop.f32.mrf.mxu0
        %v698 = vadd.f32 0.0, %v697
        %v699 = vpop.f32.mrf.mxu0
        %v700 = vpop.f32.mrf.mxu0
        %v701 = vadd.f32 0.0, %v700
        %v702 = vpop.f32.mrf.mxu0
        %703 = vdwg.mxu0
        %v704 = vld [vmem:[#allocation2 + $0x120] sm:$0xf]
        %v705 = vld [vmem:[#allocation2 + $0x128] sm:$0xf]
        %706 = vrot.lane.b32.xlu0 %v656, 127
        %v707 = vpop.permute.xlu0 %706
        %708 = vrot.lane.b32.xlu0 %v659, 127
        %v709 = vpop.permute.xlu0 %708
        %710 = vrot.lane.b32.xlu0 %v656, 126
        %v711 = vpop.permute.xlu0 %710
        %712 = vrot.lane.b32.xlu0 %v659, 126
        %v713 = vpop.permute.xlu0 %712
        %714 = vrot.lane.b32.xlu0 %v656, 125
        %v715 = vpop.permute.xlu0 %714
        %716 = vrot.lane.b32.xlu0 %v659, 125
        %v717 = vpop.permute.xlu0 %716
        %718 = vrot.lane.b32.xlu0 %v656, 124
        %v719 = vpop.permute.xlu0 %718
        %720 = vrot.lane.b32.xlu0 %v659, 124
        %v721 = vpop.permute.xlu0 %720
        %722 = vrot.lane.b32.xlu0 %v698, 127
        %v723 = vpop.permute.xlu0 %722
        %724 = vrot.lane.b32.xlu0 %v701, 127
        %v725 = vpop.permute.xlu0 %724
        %726 = vrot.lane.b32.xlu0 %v698, 126
        %v727 = vpop.permute.xlu0 %726
        %728 = vrot.lane.b32.xlu0 %v701, 126
        %v729 = vpop.permute.xlu0 %728
        %730 = vrot.lane.b32.xlu0 %v698, 125
        %v731 = vpop.permute.xlu0 %730
        %732 = vrot.lane.b32.xlu0 %v701, 125
        %v733 = vpop.permute.xlu0 %732
        %734 = vrot.lane.b32.xlu0 %v698, 124
        %v735 = vpop.permute.xlu0 %734
        %736 = vrot.lane.b32.xlu0 %v701, 124
        %v737 = vpop.permute.xlu0 %736
        %v738 = vpack.c.bf16 %v659, %v656
        %v739 = vpack.c.bf16 %v701, %v698
        %v740 = vpack.c.bf16 %v709, %v707
        %v741 = vpack.c.bf16 %v725, %v723
        %v742 = vpack.c.bf16 %v713, %v711
        %v743 = vpack.c.bf16 %v729, %v727
        %v744 = vpack.c.bf16 %v717, %v715
        %v745 = vpack.c.bf16 %v733, %v731
        %v746 = vpack.c.bf16 %v721, %v719
        %v747 = vpack.c.bf16 %v737, %v735
        %v750 = vunpack.c.l.b16 %v704
        %v751 = vunpack.c.l.b16 %v705
        %v752 = vpack.c.b16 %v751, %v750
        %v754 = vsel %vm492, %v752, 0
        %756 = vmatprep.subr.bf16.mxu0 0
        %757 = vmatpush1.bf16.msra.mxu0 0
        %758 = vmatprep.subr.bf16.mxu0 0
        %759 = vmatpush1.bf16.msra.mxu0 0
        %760 = vmatprep.subr.bf16.mxu0 %v499
        %761 = vmatpush1.bf16.msra.mxu0 %v499
        %762 = vmatprep.subr.bf16.mxu0 %v747
        %763 = vmatpush1.bf16.msra.mxu0 %v746
        %764 = vmatprep.subr.bf16.mxu0 %v745
        %765 = vmatpush1.bf16.msra.mxu0 %v744
        %766 = vmatprep.subr.bf16.mxu0 %v743
        %767 = vmatpush1.bf16.msra.mxu0 %v742
        %768 = vmatprep.subr.bf16.mxu0 %v741
        %769 = vmatpush1.bf16.msra.mxu0 %v740
        %770 = vmatprep.subr.bf16.mxu0 %v739
        %771 = vmatpush1.bf16.msra.mxu0 %v738
        %772 = vmatprep.subr.bf16.mxu0 0
        %773 = vmatpush2.bf16.msra.mxu0 0
        %774 = vmatprep.subr.bf16.mxu0 0
        %775 = vmatpush2.bf16.msra.mxu0 0
        %776 = vmatprep.subr.bf16.mxu0 0
        %777 = vmatpush2.bf16.msra.mxu0 0
        %778 = vmatprep.subr.bf16.mxu0 0
        %779 = vmatpush2.bf16.msra.mxu0 0
        %780 = vmatprep.subr.bf16.mxu0 0
        %781 = vmatpush2.bf16.msra.mxu0 0
        %782 = vmatprep.subr.bf16.mxu0 0
        %783 = vmatpush2.bf16.msra.mxu0 0
        %784 = vmatprep.subr.bf16.mxu0 0
        %785 = vmatpush2.bf16.msra.mxu0 0
        %786 = vmatprep.subr.bf16.mxu0 0
        %787 = vmatpush2.bf16.msra.mxu0 0
        %788 = vmatprep.mubr.bf16.mxu0 0
        %789 = vmatmul.mubr.bf16.gmra.mxu0 %v754
        %v790 = vpop.f32.mrf.mxu0
        %v791 = vadd.f32 0.0, %v790
        %v792 = vpop.f32.mrf.mxu0
        %v793 = vadd.f32 0.0, %v792
        %v794 = vpop.f32.mrf.mxu0
        %v795 = vadd.f32 0.0, %v794
        %v796 = vpop.f32.mrf.mxu0
        %v797 = vadd.f32 0.0, %v796
        %798 = vdwg.mxu0
        %vm799 = vcmp.ge.f32.partialorder %v791, 0.0
        %vm800 = vcmp.ge.f32.partialorder %v793, 0.0
        %vm801 = vcmp.ge.f32.partialorder %v795, 0.0
        %vm802 = vcmp.ge.f32.partialorder %v797, 0.0
        %v803 = vmul.f32 %v791, 0.01
        %v804 = vmul.f32 %v793, 0.01
        %v805 = vmul.f32 %v795, 0.01
        %v806 = vmul.f32 %v797, 0.01
        %v807 = vsel %vm799, %v791, %v803
        %v808 = vsel %vm800, %v793, %v804
        %v809 = vsel %vm801, %v795, %v805
        %v810 = vsel %vm802, %v797, %v806
        %v811 = vld [vmem:[#allocation2 + $0x130] sm:$0xf]
        %v812 = vld [vmem:[#allocation2 + $0x138] sm:$0xf]
        %v813 = vld [vmem:[#allocation2 + $0x140] sm:$0xf]
        %v814 = vld [vmem:[#allocation2 + $0x148] sm:$0xf]
        %v815 = vld [vmem:[#allocation2 + $0x150] sm:$0xf]
        %v816 = vld [vmem:[#allocation2 + $0x158] sm:$0xf]
        %v817 = vld [vmem:[#allocation2 + $0x160] sm:$0xf]
        %v818 = vld [vmem:[#allocation2 + $0x168] sm:$0xf]
        %v819 = vld [vmem:[#allocation2 + $0x170] sm:$0xf]
        %v820 = vld [vmem:[#allocation2 + $0x178] sm:$0xf]
        %v821 = vld [vmem:[#allocation2 + $0x180] sm:$0xf]
        %v822 = vld [vmem:[#allocation2 + $0x188] sm:$0xf]
        %v823 = vld [vmem:[#allocation2 + $0x190] sm:$0xf]
        %v824 = vld [vmem:[#allocation2 + $0x198] sm:$0xf]
        %v825 = vld [vmem:[#allocation2 + $0x1a0] sm:$0xf]
        %v826 = vld [vmem:[#allocation2 + $0x1a8] sm:$0xf]
        %v827 = vpack.c.bf16 %v809, %v807
        %v844 = vunpack.c.l.b16 %v811
        %v845 = vunpack.c.l.b16 %v812
        %v846 = vunpack.c.l.b16 %v813
        %v847 = vunpack.c.l.b16 %v814
        %v848 = vunpack.c.l.b16 %v815
        %v849 = vunpack.c.l.b16 %v816
        %v850 = vunpack.c.l.b16 %v817
        %v851 = vunpack.c.l.b16 %v818
        %v852 = vunpack.c.l.b16 %v819
        %v853 = vunpack.c.l.b16 %v820
        %v854 = vunpack.c.l.b16 %v821
        %v855 = vunpack.c.l.b16 %v822
        %v856 = vunpack.c.l.b16 %v823
        %v857 = vunpack.c.l.b16 %v824
        %v858 = vunpack.c.l.b16 %v825
        %v859 = vunpack.c.l.b16 %v826
        %v860 = vpack.c.b16 %v845, %v844
        %v861 = vpack.c.b16 %v847, %v846
        %v862 = vpack.c.b16 %v849, %v848
        %v863 = vpack.c.b16 %v851, %v850
        %v864 = vpack.c.b16 %v853, %v852
        %v865 = vpack.c.b16 %v855, %v854
        %v866 = vpack.c.b16 %v857, %v856
        %v867 = vpack.c.b16 %v859, %v858
        %876 = vmatprep.subr.bf16.mxu0 0
        %877 = vmatpush1.bf16.msra.mxu0 %v867
        %878 = vmatprep.subr.bf16.mxu0 0
        %879 = vmatpush1.bf16.msra.mxu0 %v866
        %880 = vmatprep.subr.bf16.mxu0 0
        %881 = vmatpush1.bf16.msra.mxu0 %v865
        %882 = vmatprep.subr.bf16.mxu0 0
        %883 = vmatpush1.bf16.msra.mxu0 %v864
        %884 = vmatprep.subr.bf16.mxu0 0
        %885 = vmatpush1.bf16.msra.mxu0 %v863
        %886 = vmatprep.subr.bf16.mxu0 0
        %887 = vmatpush1.bf16.msra.mxu0 %v862
        %888 = vmatprep.subr.bf16.mxu0 0
        %889 = vmatpush1.bf16.msra.mxu0 %v861
        %890 = vmatprep.subr.bf16.mxu0 0
        %891 = vmatpush1.bf16.msra.mxu0 %v860
        %892 = vmatprep.subr.bf16.mxu0 0
        %893 = vmatpush2.bf16.msra.mxu0 0
        %894 = vmatprep.subr.bf16.mxu0 0
        %895 = vmatpush2.bf16.msra.mxu0 0
        %896 = vmatprep.subr.bf16.mxu0 0
        %897 = vmatpush2.bf16.msra.mxu0 0
        %898 = vmatprep.subr.bf16.mxu0 0
        %899 = vmatpush2.bf16.msra.mxu0 0
        %900 = vmatprep.subr.bf16.mxu0 0
        %901 = vmatpush2.bf16.msra.mxu0 0
        %902 = vmatprep.subr.bf16.mxu0 0
        %903 = vmatpush2.bf16.msra.mxu0 0
        %904 = vmatprep.subr.bf16.mxu0 0
        %905 = vmatpush2.bf16.msra.mxu0 0
        %906 = vmatprep.subr.bf16.mxu0 0
        %907 = vmatpush2.bf16.msra.mxu0 0
        %908 = vmatprep.mubr.bf16.mxu0 0
        %909 = vmatmul.mubr.bf16.gmra.mxu0 %v827
        %v910 = vpop.f32.mrf.mxu0
        %v911 = vadd.f32 0.0, %v910
        %v912 = vpop.f32.mrf.mxu0
        %v913 = vpop.f32.mrf.mxu0
        %v914 = vadd.f32 0.0, %v913
        %v915 = vpop.f32.mrf.mxu0
        %916 = vdwg.mxu0
        %v917 = vpack.c.bf16 %v810, %v808
        %918 = vmatprep.subr.bf16.mxu0 0
        %919 = vmatpush1.bf16.msra.mxu0 %v867
        %920 = vmatprep.subr.bf16.mxu0 0
        %921 = vmatpush1.bf16.msra.mxu0 %v866
        %922 = vmatprep.subr.bf16.mxu0 0
        %923 = vmatpush1.bf16.msra.mxu0 %v865
        %924 = vmatprep.subr.bf16.mxu0 0
        %925 = vmatpush1.bf16.msra.mxu0 %v864
        %926 = vmatprep.subr.bf16.mxu0 0
        %927 = vmatpush1.bf16.msra.mxu0 %v863
        %928 = vmatprep.subr.bf16.mxu0 0
        %929 = vmatpush1.bf16.msra.mxu0 %v862
        %930 = vmatprep.subr.bf16.mxu0 0
        %931 = vmatpush1.bf16.msra.mxu0 %v861
        %932 = vmatprep.subr.bf16.mxu0 0
        %933 = vmatpush1.bf16.msra.mxu0 %v860
        %934 = vmatprep.subr.bf16.mxu0 0
        %935 = vmatpush2.bf16.msra.mxu0 0
        %936 = vmatprep.subr.bf16.mxu0 0
        %937 = vmatpush2.bf16.msra.mxu0 0
        %938 = vmatprep.subr.bf16.mxu0 0
        %939 = vmatpush2.bf16.msra.mxu0 0
        %940 = vmatprep.subr.bf16.mxu0 0
        %941 = vmatpush2.bf16.msra.mxu0 0
        %942 = vmatprep.subr.bf16.mxu0 0
        %943 = vmatpush2.bf16.msra.mxu0 0
        %944 = vmatprep.subr.bf16.mxu0 0
        %945 = vmatpush2.bf16.msra.mxu0 0
        %946 = vmatprep.subr.bf16.mxu0 0
        %947 = vmatpush2.bf16.msra.mxu0 0
        %948 = vmatprep.subr.bf16.mxu0 0
        %949 = vmatpush2.bf16.msra.mxu0 0
        %950 = vmatprep.mubr.bf16.mxu0 0
        %951 = vmatmul.mubr.bf16.gmra.mxu0 %v917
        %v952 = vpop.f32.mrf.mxu0
        %v953 = vadd.f32 0.0, %v952
        %v954 = vpop.f32.mrf.mxu0
        %v955 = vpop.f32.mrf.mxu0
        %v956 = vadd.f32 0.0, %v955
        %v957 = vpop.f32.mrf.mxu0
        %958 = vdwg.mxu0
        %v959 = vld [vmem:[#allocation2 + $0x1b0] sm:$0xff]
        %v960 = vld [vmem:[#allocation2 + $0x1b8] sm:$0xff]
        %961 = vrot.lane.b32.xlu0 %v552, 124
        %v962 = vpop.permute.xlu0 %961
        %963 = vrot.lane.b32.xlu0 %v554, 124
        %v964 = vpop.permute.xlu0 %963
        %965 = vrot.lane.b32.xlu0 %v552, 123
        %v966 = vpop.permute.xlu0 %965
        %967 = vrot.lane.b32.xlu0 %v554, 123
        %v968 = vpop.permute.xlu0 %967
        %969 = vrot.lane.b32.xlu0 %v911, 127
        %v970 = vpop.permute.xlu0 %969
        %971 = vrot.lane.b32.xlu0 %v914, 127
        %v972 = vpop.permute.xlu0 %971
        %973 = vrot.lane.b32.xlu0 %v552, 122
        %v974 = vpop.permute.xlu0 %973
        %975 = vrot.lane.b32.xlu0 %v554, 122
        %v976 = vpop.permute.xlu0 %975
        %977 = vrot.lane.b32.xlu0 %v911, 126
        %v978 = vpop.permute.xlu0 %977
        %979 = vrot.lane.b32.xlu0 %v914, 126
        %v980 = vpop.permute.xlu0 %979
        %981 = vrot.lane.b32.xlu0 %v552, 121
        %v982 = vpop.permute.xlu0 %981
        %983 = vrot.lane.b32.xlu0 %v554, 121
        %v984 = vpop.permute.xlu0 %983
        %985 = vrot.lane.b32.xlu0 %v911, 125
        %v986 = vpop.permute.xlu0 %985
        %987 = vrot.lane.b32.xlu0 %v914, 125
        %v988 = vpop.permute.xlu0 %987
        %989 = vrot.lane.b32.xlu0 %v552, 120
        %v990 = vpop.permute.xlu0 %989
        %991 = vrot.lane.b32.xlu0 %v554, 120
        %v992 = vpop.permute.xlu0 %991
        %993 = vrot.lane.b32.xlu0 %v911, 124
        %v994 = vpop.permute.xlu0 %993
        %995 = vrot.lane.b32.xlu0 %v914, 124
        %v996 = vpop.permute.xlu0 %995
        %997 = vrot.lane.b32.xlu0 %v553, 124
        %v998 = vpop.permute.xlu0 %997
        %999 = vrot.lane.b32.xlu0 %v555, 124
        %v1000 = vpop.permute.xlu0 %999
        %1001 = vrot.lane.b32.xlu0 %v553, 123
        %v1002 = vpop.permute.xlu0 %1001
        %1003 = vrot.lane.b32.xlu0 %v555, 123
        %v1004 = vpop.permute.xlu0 %1003
        %1005 = vrot.lane.b32.xlu0 %v953, 127
        %v1006 = vpop.permute.xlu0 %1005
        %1007 = vrot.lane.b32.xlu0 %v956, 127
        %v1008 = vpop.permute.xlu0 %1007
        %1009 = vrot.lane.b32.xlu0 %v553, 122
        %v1010 = vpop.permute.xlu0 %1009
        %1011 = vrot.lane.b32.xlu0 %v555, 122
        %v1012 = vpop.permute.xlu0 %1011
        %1013 = vrot.lane.b32.xlu0 %v953, 126
        %v1014 = vpop.permute.xlu0 %1013
        %1015 = vrot.lane.b32.xlu0 %v956, 126
        %v1016 = vpop.permute.xlu0 %1015
        %1017 = vrot.lane.b32.xlu0 %v553, 121
        %v1018 = vpop.permute.xlu0 %1017
        %1019 = vrot.lane.b32.xlu0 %v555, 121
        %v1020 = vpop.permute.xlu0 %1019
        %1021 = vrot.lane.b32.xlu0 %v953, 125
        %v1022 = vpop.permute.xlu0 %1021
        %1023 = vrot.lane.b32.xlu0 %v956, 125
        %v1024 = vpop.permute.xlu0 %1023
        %1025 = vrot.lane.b32.xlu0 %v553, 120
        %v1026 = vpop.permute.xlu0 %1025
        %1027 = vrot.lane.b32.xlu0 %v555, 120
        %v1028 = vpop.permute.xlu0 %1027
        %1029 = vrot.lane.b32.xlu0 %v953, 124
        %v1030 = vpop.permute.xlu0 %1029
        %1031 = vrot.lane.b32.xlu0 %v956, 124
        %v1032 = vpop.permute.xlu0 %1031
        %v1033 = vpack.c.bf16 %v964, %v962
        %v1034 = vpack.c.bf16 %v1000, %v998
        %v1035 = vpack.c.bf16 %v914, %v911
        %v1036 = vpack.c.bf16 %v956, %v953
        %v1037 = vpack.c.bf16 %v968, %v966
        %v1038 = vpack.c.bf16 %v1004, %v1002
        %v1039 = vpack.c.bf16 %v972, %v970
        %v1040 = vpack.c.bf16 %v1008, %v1006
        %v1041 = vpack.c.bf16 %v976, %v974
        %v1042 = vpack.c.bf16 %v1012, %v1010
        %v1043 = vpack.c.bf16 %v980, %v978
        %v1044 = vpack.c.bf16 %v1016, %v1014
        %v1045 = vpack.c.bf16 %v984, %v982
        %v1046 = vpack.c.bf16 %v1020, %v1018
        %v1047 = vpack.c.bf16 %v988, %v986
        %v1048 = vpack.c.bf16 %v1024, %v1022
        %v1049 = vpack.c.bf16 %v992, %v990
        %v1050 = vpack.c.bf16 %v1028, %v1026
        %v1051 = vpack.c.bf16 %v996, %v994
        %v1052 = vpack.c.bf16 %v1032, %v1030
        %v1055 = vunpack.c.l.b16 %v959
        %v1056 = vunpack.c.h.b16 %v959
        %v1057 = vunpack.c.l.b16 %v960
        %v1058 = vunpack.c.h.b16 %v960
        %v1059 = vpack.c.b16 %v1057, %v1055
        %v1060 = vpack.c.b16 %v1058, %v1056
        %vm1062 = vcmask 269312
        %v1064 = vsel %vm1062, %v1060, 0
        %1066 = vmatprep.subr.bf16.mxu0 %v1048
        %1067 = vmatpush1.bf16.msra.mxu0 %v1047
        %1068 = vmatprep.subr.bf16.mxu0 %v1046
        %1069 = vmatpush1.bf16.msra.mxu0 %v1045
        %1070 = vmatprep.subr.bf16.mxu0 %v1044
        %1071 = vmatpush1.bf16.msra.mxu0 %v1043
        %1072 = vmatprep.subr.bf16.mxu0 %v1042
        %1073 = vmatpush1.bf16.msra.mxu0 %v1041
        %1074 = vmatprep.subr.bf16.mxu0 %v1040
        %1075 = vmatpush1.bf16.msra.mxu0 %v1039
        %1076 = vmatprep.subr.bf16.mxu0 %v1038
        %1077 = vmatpush1.bf16.msra.mxu0 %v1037
        %1078 = vmatprep.subr.bf16.mxu0 %v1036
        %1079 = vmatpush1.bf16.msra.mxu0 %v1035
        %1080 = vmatprep.subr.bf16.mxu0 %v1034
        %1081 = vmatpush1.bf16.msra.mxu0 %v1033
        %1082 = vmatprep.subr.bf16.mxu0 0
        %1083 = vmatpush2.bf16.msra.mxu0 0
        %1084 = vmatprep.subr.bf16.mxu0 0
        %1085 = vmatpush2.bf16.msra.mxu0 0
        %1086 = vmatprep.subr.bf16.mxu0 0
        %1087 = vmatpush2.bf16.msra.mxu0 0
        %1088 = vmatprep.subr.bf16.mxu0 0
        %1089 = vmatpush2.bf16.msra.mxu0 0
        %1090 = vmatprep.subr.bf16.mxu0 0
        %1091 = vmatpush2.bf16.msra.mxu0 0
        %1092 = vmatprep.subr.bf16.mxu0 %v499
        %1093 = vmatpush2.bf16.msra.mxu0 %v499
        %1094 = vmatprep.subr.bf16.mxu0 %v1052
        %1095 = vmatpush2.bf16.msra.mxu0 %v1051
        %1096 = vmatprep.subr.bf16.mxu0 %v1050
        %1097 = vmatpush2.bf16.msra.mxu0 %v1049
        %1098 = vmatprep.mubr.bf16.mxu0 %v1064
        %1099 = vmatmul.mubr.bf16.gmra.mxu0 %v1059
        %v1100 = vpop.f32.mrf.mxu0
        %v1101 = vadd.f32 0.0, %v1100
        %v1102 = vpop.f32.mrf.mxu0
        %v1103 = vadd.f32 0.0, %v1102
        %v1104 = vpop.f32.mrf.mxu0
        %v1105 = vadd.f32 0.0, %v1104
        %v1106 = vpop.f32.mrf.mxu0
        %v1107 = vadd.f32 0.0, %v1106
        %1108 = vdwg.mxu0
        %vm1109 = vcmp.ge.f32.partialorder %v1101, 0.0
        %vm1110 = vcmp.ge.f32.partialorder %v1103, 0.0
        %vm1111 = vcmp.ge.f32.partialorder %v1105, 0.0
        %vm1112 = vcmp.ge.f32.partialorder %v1107, 0.0
        %v1113 = vmul.f32 %v1101, 0.01
        %v1114 = vmul.f32 %v1103, 0.01
        %v1115 = vmul.f32 %v1105, 0.01
        %v1116 = vmul.f32 %v1107, 0.01
        %v1117 = vsel %vm1109, %v1101, %v1113
        %v1118 = vsel %vm1110, %v1103, %v1114
        %v1119 = vsel %vm1111, %v1105, %v1115
        %v1120 = vsel %vm1112, %v1107, %v1116
        %v1121 = vld [vmem:[#allocation2 + $0x1c0] sm:$0xf]
        %v1122 = vld [vmem:[#allocation2 + $0x1c8] sm:$0xf]
        %v1123 = vld [vmem:[#allocation2 + $0x1d0] sm:$0xf]
        %v1124 = vld [vmem:[#allocation2 + $0x1d8] sm:$0xf]
        %v1125 = vld [vmem:[#allocation2 + $0x1e0] sm:$0xf]
        %v1126 = vld [vmem:[#allocation2 + $0x1e8] sm:$0xf]
        %v1127 = vld [vmem:[#allocation2 + $0x1f0] sm:$0xf]
        %v1128 = vld [vmem:[#allocation2 + $0x1f8] sm:$0xf]
        %v1129 = vld [vmem:[#allocation2 + $0x200] sm:$0xf]
        %v1130 = vld [vmem:[#allocation2 + $0x208] sm:$0xf]
        %v1131 = vld [vmem:[#allocation2 + $0x210] sm:$0xf]
        %v1132 = vld [vmem:[#allocation2 + $0x218] sm:$0xf]
        %v1133 = vld [vmem:[#allocation2 + $0x220] sm:$0xf]
        %v1134 = vld [vmem:[#allocation2 + $0x228] sm:$0xf]
        %v1135 = vld [vmem:[#allocation2 + $0x230] sm:$0xf]
        %v1136 = vld [vmem:[#allocation2 + $0x238] sm:$0xf]
        %v1137 = vpack.c.bf16 %v1119, %v1117
        %v1154 = vunpack.c.l.b16 %v1121
        %v1155 = vunpack.c.l.b16 %v1122
        %v1156 = vunpack.c.l.b16 %v1123
        %v1157 = vunpack.c.l.b16 %v1124
        %v1158 = vunpack.c.l.b16 %v1125
        %v1159 = vunpack.c.l.b16 %v1126
        %v1160 = vunpack.c.l.b16 %v1127
        %v1161 = vunpack.c.l.b16 %v1128
        %v1162 = vunpack.c.l.b16 %v1129
        %v1163 = vunpack.c.l.b16 %v1130
        %v1164 = vunpack.c.l.b16 %v1131
        %v1165 = vunpack.c.l.b16 %v1132
        %v1166 = vunpack.c.l.b16 %v1133
        %v1167 = vunpack.c.l.b16 %v1134
        %v1168 = vunpack.c.l.b16 %v1135
        %v1169 = vunpack.c.l.b16 %v1136
        %v1170 = vpack.c.b16 %v1155, %v1154
        %v1171 = vpack.c.b16 %v1157, %v1156
        %v1172 = vpack.c.b16 %v1159, %v1158
        %v1173 = vpack.c.b16 %v1161, %v1160
        %v1174 = vpack.c.b16 %v1163, %v1162
        %v1175 = vpack.c.b16 %v1165, %v1164
        %v1176 = vpack.c.b16 %v1167, %v1166
        %v1177 = vpack.c.b16 %v1169, %v1168
        %1186 = vmatprep.subr.bf16.mxu0 0
        %1187 = vmatpush1.bf16.msra.mxu0 %v1177
        %1188 = vmatprep.subr.bf16.mxu0 0
        %1189 = vmatpush1.bf16.msra.mxu0 %v1176
        %1190 = vmatprep.subr.bf16.mxu0 0
        %1191 = vmatpush1.bf16.msra.mxu0 %v1175
        %1192 = vmatprep.subr.bf16.mxu0 0
        %1193 = vmatpush1.bf16.msra.mxu0 %v1174
        %1194 = vmatprep.subr.bf16.mxu0 0
        %1195 = vmatpush1.bf16.msra.mxu0 %v1173
        %1196 = vmatprep.subr.bf16.mxu0 0
        %1197 = vmatpush1.bf16.msra.mxu0 %v1172
        %1198 = vmatprep.subr.bf16.mxu0 0
        %1199 = vmatpush1.bf16.msra.mxu0 %v1171
        %1200 = vmatprep.subr.bf16.mxu0 0
        %1201 = vmatpush1.bf16.msra.mxu0 %v1170
        %1202 = vmatprep.subr.bf16.mxu0 0
        %1203 = vmatpush2.bf16.msra.mxu0 0
        %1204 = vmatprep.subr.bf16.mxu0 0
        %1205 = vmatpush2.bf16.msra.mxu0 0
        %1206 = vmatprep.subr.bf16.mxu0 0
        %1207 = vmatpush2.bf16.msra.mxu0 0
        %1208 = vmatprep.subr.bf16.mxu0 0
        %1209 = vmatpush2.bf16.msra.mxu0 0
        %1210 = vmatprep.subr.bf16.mxu0 0
        %1211 = vmatpush2.bf16.msra.mxu0 0
        %1212 = vmatprep.subr.bf16.mxu0 0
        %1213 = vmatpush2.bf16.msra.mxu0 0
        %1214 = vmatprep.subr.bf16.mxu0 0
        %1215 = vmatpush2.bf16.msra.mxu0 0
        %1216 = vmatprep.subr.bf16.mxu0 0
        %1217 = vmatpush2.bf16.msra.mxu0 0
        %1218 = vmatprep.mubr.bf16.mxu0 0
        %1219 = vmatmul.mubr.bf16.gmra.mxu0 %v1137
        %v1220 = vpop.f32.mrf.mxu0
        %v1221 = vadd.f32 0.0, %v1220
        %v1222 = vpop.f32.mrf.mxu0
        %v1223 = vpop.f32.mrf.mxu0
        %v1224 = vadd.f32 0.0, %v1223
        %v1225 = vpop.f32.mrf.mxu0
        %1226 = vdwg.mxu0
        %v1227 = vpack.c.bf16 %v1120, %v1118
        %1228 = vmatprep.subr.bf16.mxu0 0
        %1229 = vmatpush1.bf16.msra.mxu0 %v1177
        %1230 = vmatprep.subr.bf16.mxu0 0
        %1231 = vmatpush1.bf16.msra.mxu0 %v1176
        %1232 = vmatprep.subr.bf16.mxu0 0
        %1233 = vmatpush1.bf16.msra.mxu0 %v1175
        %1234 = vmatprep.subr.bf16.mxu0 0
        %1235 = vmatpush1.bf16.msra.mxu0 %v1174
        %1236 = vmatprep.subr.bf16.mxu0 0
        %1237 = vmatpush1.bf16.msra.mxu0 %v1173
        %1238 = vmatprep.subr.bf16.mxu0 0
        %1239 = vmatpush1.bf16.msra.mxu0 %v1172
        %1240 = vmatprep.subr.bf16.mxu0 0
        %1241 = vmatpush1.bf16.msra.mxu0 %v1171
        %1242 = vmatprep.subr.bf16.mxu0 0
        %1243 = vmatpush1.bf16.msra.mxu0 %v1170
        %1244 = vmatprep.subr.bf16.mxu0 0
        %1245 = vmatpush2.bf16.msra.mxu0 0
        %1246 = vmatprep.subr.bf16.mxu0 0
        %1247 = vmatpush2.bf16.msra.mxu0 0
        %1248 = vmatprep.subr.bf16.mxu0 0
        %1249 = vmatpush2.bf16.msra.mxu0 0
        %1250 = vmatprep.subr.bf16.mxu0 0
        %1251 = vmatpush2.bf16.msra.mxu0 0
        %1252 = vmatprep.subr.bf16.mxu0 0
        %1253 = vmatpush2.bf16.msra.mxu0 0
        %1254 = vmatprep.subr.bf16.mxu0 0
        %1255 = vmatpush2.bf16.msra.mxu0 0
        %1256 = vmatprep.subr.bf16.mxu0 0
        %1257 = vmatpush2.bf16.msra.mxu0 0
        %1258 = vmatprep.subr.bf16.mxu0 0
        %1259 = vmatpush2.bf16.msra.mxu0 0
        %1260 = vmatprep.mubr.bf16.mxu0 0
        %1261 = vmatmul.mubr.bf16.gmra.mxu0 %v1227
        %v1262 = vpop.f32.mrf.mxu0
        %v1263 = vadd.f32 0.0, %v1262
        %v1264 = vpop.f32.mrf.mxu0
        %v1265 = vpop.f32.mrf.mxu0
        %v1266 = vadd.f32 0.0, %v1265
        %v1267 = vpop.f32.mrf.mxu0
        %1268 = vdwg.mxu0
        %v1269 = vld [vmem:[#allocation2 + $0x240] sm:$0xff]
        %v1270 = vld [vmem:[#allocation2 + $0x248] sm:$0xff]
        %1271 = vrot.lane.b32.xlu0 %v290, 112
        %v1272 = vpop.permute.xlu0 %1271
        %1273 = vrot.lane.b32.xlu0 %v292, 112
        %v1274 = vpop.permute.xlu0 %1273
        %1275 = vrot.lane.b32.xlu0 %v290, 111
        %v1276 = vpop.permute.xlu0 %1275
        %1277 = vrot.lane.b32.xlu0 %v292, 111
        %v1278 = vpop.permute.xlu0 %1277
        %1279 = vrot.lane.b32.xlu0 %v1221, 127
        %v1280 = vpop.permute.xlu0 %1279
        %1281 = vrot.lane.b32.xlu0 %v1224, 127
        %v1282 = vpop.permute.xlu0 %1281
        %1283 = vrot.lane.b32.xlu0 %v290, 110
        %v1284 = vpop.permute.xlu0 %1283
        %1285 = vrot.lane.b32.xlu0 %v292, 110
        %v1286 = vpop.permute.xlu0 %1285
        %1287 = vrot.lane.b32.xlu0 %v1221, 126
        %v1288 = vpop.permute.xlu0 %1287
        %1289 = vrot.lane.b32.xlu0 %v1224, 126
        %v1290 = vpop.permute.xlu0 %1289
        %1291 = vrot.lane.b32.xlu0 %v290, 109
        %v1292 = vpop.permute.xlu0 %1291
        %1293 = vrot.lane.b32.xlu0 %v292, 109
        %v1294 = vpop.permute.xlu0 %1293
        %1295 = vrot.lane.b32.xlu0 %v1221, 125
        %v1296 = vpop.permute.xlu0 %1295
        %1297 = vrot.lane.b32.xlu0 %v1224, 125
        %v1298 = vpop.permute.xlu0 %1297
        %1299 = vrot.lane.b32.xlu0 %v290, 108
        %v1300 = vpop.permute.xlu0 %1299
        %1301 = vrot.lane.b32.xlu0 %v292, 108
        %v1302 = vpop.permute.xlu0 %1301
        %1303 = vrot.lane.b32.xlu0 %v1221, 124
        %v1304 = vpop.permute.xlu0 %1303
        %1305 = vrot.lane.b32.xlu0 %v1224, 124
        %v1306 = vpop.permute.xlu0 %1305
        %1307 = vrot.lane.b32.xlu0 %v291, 112
        %v1308 = vpop.permute.xlu0 %1307
        %1309 = vrot.lane.b32.xlu0 %v293, 112
        %v1310 = vpop.permute.xlu0 %1309
        %1311 = vrot.lane.b32.xlu0 %v291, 111
        %v1312 = vpop.permute.xlu0 %1311
        %1313 = vrot.lane.b32.xlu0 %v293, 111
        %v1314 = vpop.permute.xlu0 %1313
        %1315 = vrot.lane.b32.xlu0 %v1263, 127
        %v1316 = vpop.permute.xlu0 %1315
        %1317 = vrot.lane.b32.xlu0 %v1266, 127
        %v1318 = vpop.permute.xlu0 %1317
        %1319 = vrot.lane.b32.xlu0 %v291, 110
        %v1320 = vpop.permute.xlu0 %1319
        %1321 = vrot.lane.b32.xlu0 %v293, 110
        %v1322 = vpop.permute.xlu0 %1321
        %1323 = vrot.lane.b32.xlu0 %v1263, 126
        %v1324 = vpop.permute.xlu0 %1323
        %1325 = vrot.lane.b32.xlu0 %v1266, 126
        %v1326 = vpop.permute.xlu0 %1325
        %1327 = vrot.lane.b32.xlu0 %v291, 109
        %v1328 = vpop.permute.xlu0 %1327
        %1329 = vrot.lane.b32.xlu0 %v293, 109
        %v1330 = vpop.permute.xlu0 %1329
        %1331 = vrot.lane.b32.xlu0 %v1263, 125
        %v1332 = vpop.permute.xlu0 %1331
        %1333 = vrot.lane.b32.xlu0 %v1266, 125
        %v1334 = vpop.permute.xlu0 %1333
        %1335 = vrot.lane.b32.xlu0 %v291, 108
        %v1336 = vpop.permute.xlu0 %1335
        %1337 = vrot.lane.b32.xlu0 %v293, 108
        %v1338 = vpop.permute.xlu0 %1337
        %1339 = vrot.lane.b32.xlu0 %v1263, 124
        %v1340 = vpop.permute.xlu0 %1339
        %1341 = vrot.lane.b32.xlu0 %v1266, 124
        %v1342 = vpop.permute.xlu0 %1341
        %v1343 = vpack.c.bf16 %v1274, %v1272
        %v1344 = vpack.c.bf16 %v1310, %v1308
        %v1345 = vpack.c.bf16 %v1224, %v1221
        %v1346 = vpack.c.bf16 %v1266, %v1263
        %v1347 = vpack.c.bf16 %v1278, %v1276
        %v1348 = vpack.c.bf16 %v1314, %v1312
        %v1349 = vpack.c.bf16 %v1282, %v1280
        %v1350 = vpack.c.bf16 %v1318, %v1316
        %v1351 = vpack.c.bf16 %v1286, %v1284
        %v1352 = vpack.c.bf16 %v1322, %v1320
        %v1353 = vpack.c.bf16 %v1290, %v1288
        %v1354 = vpack.c.bf16 %v1326, %v1324
        %v1355 = vpack.c.bf16 %v1294, %v1292
        %v1356 = vpack.c.bf16 %v1330, %v1328
        %v1357 = vpack.c.bf16 %v1298, %v1296
        %v1358 = vpack.c.bf16 %v1334, %v1332
        %v1359 = vpack.c.bf16 %v1302, %v1300
        %v1360 = vpack.c.bf16 %v1338, %v1336
        %v1361 = vpack.c.bf16 %v1306, %v1304
        %v1362 = vpack.c.bf16 %v1342, %v1340
        %v1365 = vunpack.c.l.b16 %v1269
        %v1366 = vunpack.c.h.b16 %v1269
        %v1367 = vunpack.c.l.b16 %v1270
        %v1368 = vunpack.c.h.b16 %v1270
        %v1369 = vpack.c.b16 %v1367, %v1365
        %v1370 = vpack.c.b16 %v1368, %v1366
        %v1373 = vsel %vm1062, %v1370, 0
        %1375 = vmatprep.subr.bf16.mxu0 %v1358
        %1376 = vmatpush1.bf16.msra.mxu0 %v1357
        %1377 = vmatprep.subr.bf16.mxu0 %v1356
        %1378 = vmatpush1.bf16.msra.mxu0 %v1355
        %1379 = vmatprep.subr.bf16.mxu0 %v1354
        %1380 = vmatpush1.bf16.msra.mxu0 %v1353
        %1381 = vmatprep.subr.bf16.mxu0 %v1352
        %1382 = vmatpush1.bf16.msra.mxu0 %v1351
        %1383 = vmatprep.subr.bf16.mxu0 %v1350
        %1384 = vmatpush1.bf16.msra.mxu0 %v1349
        %1385 = vmatprep.subr.bf16.mxu0 %v1348
        %1386 = vmatpush1.bf16.msra.mxu0 %v1347
        %1387 = vmatprep.subr.bf16.mxu0 %v1346
        %1388 = vmatpush1.bf16.msra.mxu0 %v1345
        %1389 = vmatprep.subr.bf16.mxu0 %v1344
        %1390 = vmatpush1.bf16.msra.mxu0 %v1343
        %1391 = vmatprep.subr.bf16.mxu0 0
        %1392 = vmatpush2.bf16.msra.mxu0 0
        %1393 = vmatprep.subr.bf16.mxu0 0
        %1394 = vmatpush2.bf16.msra.mxu0 0
        %1395 = vmatprep.subr.bf16.mxu0 0
        %1396 = vmatpush2.bf16.msra.mxu0 0
        %1397 = vmatprep.subr.bf16.mxu0 0
        %1398 = vmatpush2.bf16.msra.mxu0 0
        %1399 = vmatprep.subr.bf16.mxu0 0
        %1400 = vmatpush2.bf16.msra.mxu0 0
        %1401 = vmatprep.subr.bf16.mxu0 %v499
        %1402 = vmatpush2.bf16.msra.mxu0 %v499
        %1403 = vmatprep.subr.bf16.mxu0 %v1362
        %1404 = vmatpush2.bf16.msra.mxu0 %v1361
        %1405 = vmatprep.subr.bf16.mxu0 %v1360
        %1406 = vmatpush2.bf16.msra.mxu0 %v1359
        %1407 = vmatprep.mubr.bf16.mxu0 %v1373
        %1408 = vmatmul.mubr.bf16.gmra.mxu0 %v1369
        %v1409 = vpop.f32.mrf.mxu0
        %v1410 = vadd.f32 0.0, %v1409
        %v1411 = vpop.f32.mrf.mxu0
        %v1412 = vadd.f32 0.0, %v1411
        %v1413 = vpop.f32.mrf.mxu0
        %v1414 = vadd.f32 0.0, %v1413
        %v1415 = vpop.f32.mrf.mxu0
        %v1416 = vadd.f32 0.0, %v1415
        %1417 = vdwg.mxu0
        %vm1418 = vcmp.ge.f32.partialorder %v1410, 0.0
        %vm1419 = vcmp.ge.f32.partialorder %v1412, 0.0
        %vm1420 = vcmp.ge.f32.partialorder %v1414, 0.0
        %vm1421 = vcmp.ge.f32.partialorder %v1416, 0.0
        %v1422 = vmul.f32 %v1410, 0.01
        %v1423 = vmul.f32 %v1412, 0.01
        %v1424 = vmul.f32 %v1414, 0.01
        %v1425 = vmul.f32 %v1416, 0.01
        %v1426 = vsel %vm1418, %v1410, %v1422
        %v1427 = vsel %vm1419, %v1412, %v1423
        %v1428 = vsel %vm1420, %v1414, %v1424
        %v1429 = vsel %vm1421, %v1416, %v1425
        %v1430 = vld [vmem:[#allocation2 + $0x250] sm:$0xf]
        %v1431 = vld [vmem:[#allocation2 + $0x258] sm:$0xf]
        %v1432 = vld [vmem:[#allocation2 + $0x260] sm:$0xf]
        %v1433 = vld [vmem:[#allocation2 + $0x268] sm:$0xf]
        %v1434 = vpack.c.bf16 %v1428, %v1426
        %v1435 = vpack.c.bf16 %v1429, %v1427
        %v1440 = vunpack.c.l.b16 %v1430
        %v1441 = vunpack.c.l.b16 %v1431
        %v1442 = vunpack.c.l.b16 %v1432
        %v1443 = vunpack.c.l.b16 %v1433
        %v1444 = vpack.c.b16 %v1441, %v1440
        %v1445 = vpack.c.b16 %v1443, %v1442
        %vm1446 = vcmask 138240
        %v1448 = vsel %vm1446, %v1444, 0
        %v1451 = vsel %vm1446, %v1445, 0
        %1453 = vmatprep.subr.bf16.mxu0 0
        %1454 = vmatpush1.bf16.msra.mxu0 0
        %1455 = vmatprep.subr.bf16.mxu0 0
        %1456 = vmatpush1.bf16.msra.mxu0 0
        %1457 = vmatprep.subr.bf16.mxu0 0
        %1458 = vmatpush1.bf16.msra.mxu0 0
        %1459 = vmatprep.subr.bf16.mxu0 0
        %1460 = vmatpush1.bf16.msra.mxu0 0
        %1461 = vmatprep.subr.bf16.mxu0 0
        %1462 = vmatpush1.bf16.msra.mxu0 0
        %1463 = vmatprep.subr.bf16.mxu0 0
        %1464 = vmatpush1.bf16.msra.mxu0 0
        %1465 = vmatprep.subr.bf16.mxu0 %v499
        %1466 = vmatpush1.bf16.msra.mxu0 %v499
        %1467 = vmatprep.subr.bf16.mxu0 %v1435
        %1468 = vmatpush1.bf16.msra.mxu0 %v1434
        %1469 = vmatprep.subr.bf16.mxu0 0
        %1470 = vmatpush2.bf16.msra.mxu0 0
        %1471 = vmatprep.subr.bf16.mxu0 0
        %1472 = vmatpush2.bf16.msra.mxu0 0
        %1473 = vmatprep.subr.bf16.mxu0 0
        %1474 = vmatpush2.bf16.msra.mxu0 0
        %1475 = vmatprep.subr.bf16.mxu0 0
        %1476 = vmatpush2.bf16.msra.mxu0 0
        %1477 = vmatprep.subr.bf16.mxu0 0
        %1478 = vmatpush2.bf16.msra.mxu0 0
        %1479 = vmatprep.subr.bf16.mxu0 0
        %1480 = vmatpush2.bf16.msra.mxu0 0
        %1481 = vmatprep.subr.bf16.mxu0 0
        %1482 = vmatpush2.bf16.msra.mxu0 0
        %1483 = vmatprep.subr.bf16.mxu0 0
        %1484 = vmatpush2.bf16.msra.mxu0 0
        %1485 = vmatprep.mubr.bf16.mxu0 0
        %1486 = vmatmul.mubr.bf16.gmra.mxu0 %v1448
        %v1487 = vpop.f32.mrf.mxu0
        %v1488 = vadd.f32 0.0, %v1487
        %v1489 = vpop.f32.mrf.mxu0
        %v1490 = vadd.f32 0.0, %v1489
        %v1491 = vpop.f32.mrf.mxu0
        %v1492 = vadd.f32 0.0, %v1491
        %v1493 = vpop.f32.mrf.mxu0
        %v1494 = vadd.f32 0.0, %v1493
        %1495 = vmatprep.mubr.bf16.mxu0 0
        %1496 = vmatmul.mubr.bf16.gmra.mxu0 %v1451
        %v1497 = vpop.f32.mrf.mxu0
        %v1498 = vadd.f32 0.0, %v1497
        %v1499 = vpop.f32.mrf.mxu0
        %v1500 = vadd.f32 0.0, %v1499
        %v1501 = vpop.f32.mrf.mxu0
        %v1502 = vadd.f32 0.0, %v1501
        %v1503 = vpop.f32.mrf.mxu0
        %v1504 = vadd.f32 0.0, %v1503
        %1505 = vdwg.mxu0
        %v1506 = vlaneseq
        %v1507 = vshrl.u32 %v1506, 7
        %v1508 = vadd.s32 %v1507, 8
        %v1509 = vadd.s32 %v1507, 16
        %v1510 = vadd.s32 %v1507, 24
        %vm1511 = vcmp.lt.s32.totalorder %v1507, 29
        %vm1512 = vcmp.lt.s32.totalorder %v1508, 29
        %vm1513 = vcmp.lt.s32.totalorder %v1509, 29
        %vm1514 = vcmp.lt.s32.totalorder %v1510, 29
        %v1515 = vsel %vm1511, %v1488, -1e+30
        %v1516 = vsel %vm1511, %v1490, -1e+30
        %v1517 = vsel %vm1512, %v1492, -1e+30
        %v1518 = vsel %vm1512, %v1494, -1e+30
        %v1519 = vsel %vm1513, %v1498, -1e+30
        %v1520 = vsel %vm1513, %v1500, -1e+30
        %v1521 = vsel %vm1514, %v1502, -1e+30
        %v1522 = vsel %vm1514, %v1504, -1e+30
        %v1523 = vmax.f32 %v1515, %v1519
        %v1524 = vmax.f32 %v1517, %v1521
        %v1525 = vmax.f32 %v1523, %v1524
        %v1526 = vrot.slane %v1525, 4
        %v1527 = vmax.f32 %v1525, %v1526
        %v1528 = vrot.slane %v1527, 2
        %v1529 = vmax.f32 %v1527, %v1528
        %v1530 = vrot.slane %v1529, 1
        %v1531 = vmax.f32 %v1529, %v1530
        %v1532 = vmax.f32 %v1516, %v1520
        %v1533 = vmax.f32 %v1518, %v1522
        %v1534 = vmax.f32 %v1532, %v1533
        %v1535 = vrot.slane %v1534, 4
        %v1536 = vmax.f32 %v1534, %v1535
        %v1537 = vrot.slane %v1536, 2
        %v1538 = vmax.f32 %v1536, %v1537
        %v1539 = vrot.slane %v1538, 1
        %v1540 = vmax.f32 %v1538, %v1539
        %v1541 = vsub.f32 %v1515, %v1531
        %v1542 = vsub.f32 %v1516, %v1540
        %v1543 = vsub.f32 %v1517, %v1531
        %v1544 = vsub.f32 %v1518, %v1540
        %v1545 = vsub.f32 %v1519, %v1531
        %v1546 = vsub.f32 %v1520, %v1540
        %v1547 = vsub.f32 %v1521, %v1531
        %v1548 = vsub.f32 %v1522, %v1540
        %v1549 = vmul.f32 %v1541, 1.442695
        %v1550 = vpow.pop %v1549
        %v1551 = vmul.f32 %v1542, 1.442695
        %v1552 = vpow.pop %v1551
        %v1553 = vmul.f32 %v1543, 1.442695
        %v1554 = vpow.pop %v1553
        %v1555 = vmul.f32 %v1544, 1.442695
        %v1556 = vpow.pop %v1555
        %v1557 = vmul.f32 %v1545, 1.442695
        %v1558 = vpow.pop %v1557
        %v1559 = vmul.f32 %v1546, 1.442695
        %v1560 = vpow.pop %v1559
        %v1561 = vmul.f32 %v1547, 1.442695
        %v1562 = vpow.pop %v1561
        %v1563 = vmul.f32 %v1548, 1.442695
        %v1564 = vpow.pop %v1563
        %v1565 = vadd.f32 %v1550, %v1554
        %v1566 = vadd.f32 %v1565, %v1558
        %v1567 = vadd.f32 %v1566, %v1562
        %v1568 = vrot.slane %v1567, 4
        %v1569 = vadd.f32 %v1567, %v1568
        %v1570 = vrot.slane %v1569, 2
        %v1571 = vadd.f32 %v1569, %v1570
        %v1572 = vrot.slane %v1571, 1
        %v1573 = vadd.f32 %v1571, %v1572
        %v1574 = vadd.f32 %v1552, %v1556
        %v1575 = vadd.f32 %v1574, %v1560
        %v1576 = vadd.f32 %v1575, %v1564
        %v1577 = vrot.slane %v1576, 4
        %v1578 = vadd.f32 %v1576, %v1577
        %v1579 = vrot.slane %v1578, 2
        %v1580 = vadd.f32 %v1578, %v1579
        %v1581 = vrot.slane %v1580, 1
        %v1582 = vadd.f32 %v1580, %v1581
        %v1583 = vlog2.pop %v1573
        %v1584 = vmul.f32 %v1583, 0.6931472
        %v1585 = vlog2.pop %v1582
        %v1586 = vmul.f32 %v1585, 0.6931472
        %v1587 = vsub.f32 %v1541, %v1584
        %v1588 = vsub.f32 %v1542, %v1586
        %v1589 = vsub.f32 %v1543, %v1584
        %v1590 = vsub.f32 %v1544, %v1586
        %v1591 = vsub.f32 %v1545, %v1584
        %v1592 = vsub.f32 %v1546, %v1586
        %v1593 = vsub.f32 %v1547, %v1584
        %v1594 = vsub.f32 %v1548, %v1586
        %1595 = vst [vmem:[%s159] sm:$0xff] %v1587
        %1596 = vst [vmem:[%s159 + $0x8] sm:$0xff] %v1589
        %1597 = vst [vmem:[%s159 + $0x10] sm:$0xff] %v1591
        %1598 = vst [vmem:[%s159 + $0x18] sm:$0xff] %v1593
        %s1599 = scalar_lea.vmem %s159, 32
        %1600 = vst [vmem:[%s1599] sm:$0xff] %v1588
        %1601 = vst [vmem:[%s1599 + $0x8] sm:$0xff] %v1590
        %1602 = vst [vmem:[%s1599 + $0x10] sm:$0xff] %v1592
        %1603 = vst [vmem:[%s1599 + $0x18] sm:$0xff] %v1594
        %s1604 = smul.u32 2, %s14
        %p1605 = scmp.lt.s32.totalorder %s1604, 3
        %s1606 = scalar_select %p1605, %s1604, 3
        %s1607 = smul.addr %s1606, 4
        %s1608 = smul.addr %s1607, 8
        %s1609 = scalar_lea.vmem %s2, %s1608
        // Predicated region
        $region33: #{forward.1} parent=27 // pred_check
          %p1610 = pneg %p79
        $region34: #{forward.1} parent=27 // pred_check_branch
          %1612 = sbr.rel (%p1610) target = $region36
        $region35: #{forward.1} parent=27 // pred_region
          %s1613 = smul.u32 2, %s14
        $region36: #{forward.1} parent=27 // pred_fallthru
          _
      $region28: #{forward.1} parent=5 // pred_fallthru
        _
      %p1614 = scmp.le.s32.totalorder 2, %s9
      // Predicated region
      $region37: #{forward.1} parent=5 // pred_check
        %p1615 = pneg %p1614
      $region38: #{forward.1} parent=5 // pred_check_branch
        %1617 = sbr.rel (%p1615) target = $region40
      $region39: #{forward.1} parent=5 // pred_region
        %s1618 = ssub.s32 %s9, 2
        // Predicated region
        $region41: #{forward.1} parent=39 // pred_check
          %p1619 = pneg %p85
        $region42: #{forward.1} parent=39 // pred_check_branch
          %1621 = sbr.rel (%p1619) target = $region44
        $region43: #{forward.1} parent=39 // pred_region
          %s1622 = smul.u32 2, %s15
          %p1623 = scmp.lt.s32.totalorder %s1622, 3
          %s1624 = scalar_select %p1623, %s1622, 3
          %s1625 = smul.addr %s1624, 4
          %s1626 = smul.addr %s1625, 8
          %s1627 = scalar_lea.vmem %s2, %s1626
        $region44: #{forward.1} parent=39 // pred_fallthru
          _
      $region40: #{forward.1} parent=5 // pred_fallthru
        _
    $region6: #{forward.1} parent=1 // loop_footer
      %s13 = sadd.s32 1, %s9
    $region7: #{forward.1} parent=1 // loop_footer_branch
      %8 = sbr.rel target = $region3
    $region8: #{forward.1} parent=1 // loop_exit
      _
    %1628 = vsyncpa [#allocation3], 1
    %s1629 = scalar_lea.sflag [#allocation3], 1
    %1630 = vsyncpa %s1629, 1

</llo_original>
